<compile_context>
chip_gen: v6e
topology: v6e:2x2x1
jax: 0.10.0
libtpu: 0.0.40
codegen_flags: <defaults>
</compile_context>

<pallas_src>
import functools

import jax
import jax.numpy as jnp
from jax.experimental import pallas as pl
from jax.experimental.pallas import tpu as pltpu


# --------------------------------------------------------------------------------------
# Kernel
# --------------------------------------------------------------------------------------
def _attention_kernel(x_ref, w1_ref, b1_ref, w2_ref, b2_ref, ctx_ref, attn_ref,
                      *, s_valid, bf16_elementwise):
    # x_ref : (TB, S, H) bf16      w1_ref: (H, H) bf16
    # b1_ref: (1, H)  f32          w2_ref: (1, H) f32      b2_ref: (1, 1) f32
    TB, S, H = x_ref.shape

    # ---- scores: Linear(H,H) -> tanh -> Linear(H,1) ---------------------------------
    x2d = x_ref[...].reshape(TB * S, H)                      # M = TB*S rows into the MXU
    acc = jnp.dot(x2d, w1_ref[...],
                  preferred_element_type=jnp.float32) + b1_ref[...]      # (TB*S, H) f32

    if bf16_elementwise:
        # v6e/v7x: bf16 EUP tanh (~2x throughput, half the vreg footprint for h)
        h = jnp.tanh(acc.astype(jnp.bfloat16))
    else:
        # v5e: no bf16 VPU/EUP -> keep f32 elementwise math
        h = jnp.tanh(acc)

    # Linear(H, 1) as VPU multiply + lane reduction (avoids an N=1 MXU matmul);
    # h (bf16 or f32) * f32 w2 promotes to f32, so accumulation stays f32.
    s = jnp.sum(h * w2_ref[...], axis=-1, keepdims=True) + b2_ref[...]   # (TB*S, 1) f32
    scores = s.reshape(TB, S)                                            # lane-dense

    # Mask padded sequence positions (static no-op when S == s_valid).
    if s_valid < S:
        col = jax.lax.broadcasted_iota(jnp.int32, (TB, S), 1)
        scores = jnp.where(col < s_valid, scores, jnp.float32(-1e30))

    # ---- softmax over the sequence (lane) axis ---------------------------------------
    m = jnp.max(scores, axis=-1, keepdims=True)                          # (TB, 1)
    e = jnp.exp(scores - m)                                              # (TB, S)
    w = e * pl.reciprocal(jnp.sum(e, axis=-1, keepdims=True), approx=True)

    attn_ref[...] = w                                                    # lane-dense store

    # ---- context = sum_s x * w --------------------------------------------------------
    # Re-read x from VMEM here (short live range); bf16 x * f32 w promotes to f32.
    ctx_ref[...] = jnp.sum(x_ref[...] * w[:, :, None], axis=1)           # (TB, H) f32


# --------------------------------------------------------------------------------------
# Tiling / per-generation configuration
# --------------------------------------------------------------------------------------
def _pad_to(n, m):
    return -(-n // m) * m


def _generation_params():
    try:
        kind = jax.devices()[0].device_kind.lower()
    except Exception:  # pragma: no cover - fall back to conservative defaults
        kind = ""
    is_v7 = ("v7" in kind) or ("7x" in kind)
    if is_v7:
        vmem_budget = 40 * (1 << 20)    # out of 64 MiB/TC; leave compiler headroom
        limit_cap = 56 * (1 << 20)
        min_steps = 4                   # 2 TensorCores -> want >= 2 steps per core
    else:
        vmem_budget = 88 * (1 << 20)    # v5e/v6e: 128 MiB physical VMEM
        limit_cap = 112 * (1 << 20)
        min_steps = 1
    # bf16 elementwise (tanh) only where the VPU/EUP supports it (v6e/v7x and newer).
    bf16_elem = not any(g in kind for g in ("v2", "v3", "v4", "v5"))
    return vmem_budget, limit_cap, min_steps, bf16_elem


def _vmem_footprint(tb, s, h, hbytes):
    x_slab = tb * s * h * 2            # bf16 x, per pipeline buffer
    w1 = h * h * 2                     # bf16 W1 (budgeted double just in case)
    acc = tb * s * h * 4               # f32 matmul accumulator
    h_act = tb * s * h * hbytes        # tanh activation
    ctx = tb * h * 4
    attn = tb * s * 4
    small = 4 * h * 4
    return 2 * x_slab + 2 * w1 + acc + h_act + 2 * (ctx + attn) + small


def _choose_tb(B, s_pad, H, hbytes, vmem_budget, min_steps):
    # Target ~2048 rows (TB*S) per grid step; TB is a multiple of 8 (full-sublane stores,
    # cheap (TB,S,H)->(TB*S,H) reshape).  Shrink until the VMEM footprint fits the budget.
    target_rows = 2048
    tb = max(8, (target_rows // max(s_pad, 1)) // 8 * 8)
    while tb > 8 and _vmem_footprint(tb, s_pad, H, hbytes) > vmem_budget:
        tb -= 8
    # v7x: keep enough grid steps for both TensorCores (best effort at tiny B).
    if min_steps > 1:
        cap = max(8, (-(-B // min_steps)) // 8 * 8)
        tb = min(tb, cap)
    tb = min(tb, _pad_to(B, 8))
    return max(tb, 8)


# --------------------------------------------------------------------------------------
# Wrapper
# --------------------------------------------------------------------------------------
def attention_layer(hidden_states, w1, b1, w2, b2):
    """hidden_states: (B, S, H) f32; w1 (H, H) in (in, out) layout; b1 (H,); w2 (H, 1); b2 (1,).

    Returns (context (B, H) f32, attention_weights (B, S, 1) f32)."""
    B, S, H = hidden_states.shape
    vmem_budget, limit_cap, min_steps, bf16_elem = _generation_params()

    S_pad = _pad_to(S, 8)
    hbytes = 2 if bf16_elem else 4
    TB = _choose_tb(B, S_pad, H, hbytes, vmem_budget, min_steps)
    B_pad = _pad_to(B, TB)
    nb = B_pad // TB

    # bf16 x shipped to the kernel (halves HBM traffic / VMEM); pad B and S with zeros.
    x = hidden_states.astype(jnp.bfloat16)
    if (B_pad, S_pad) != (B, S):
        x = jnp.pad(x, ((0, B_pad - B), (0, S_pad - S), (0, 0)))

    w1_bf = w1.astype(jnp.bfloat16)
    b1_2d = b1.reshape(1, H).astype(jnp.float32)
    w2_row = w2.reshape(1, H).astype(jnp.float32)
    b2_2d = b2.reshape(1, 1).astype(jnp.float32)

    kernel = functools.partial(_attention_kernel, s_valid=S, bf16_elementwise=bf16_elem)

    out_shapes = (
        jax.ShapeDtypeStruct((B_pad, H), jnp.float32),     # context
        jax.ShapeDtypeStruct((B_pad, S_pad), jnp.float32),  # attention weights (lane-dense)
    )

    vmem_limit = int(min(limit_cap,
                         max(32 * (1 << 20), 2 * _vmem_footprint(TB, S_pad, H, hbytes))))

    def _run(single_buffer_w1):
        w1_kwargs = {"pipeline_mode": pl.Buffered(1)} if single_buffer_w1 else {}
        grid_spec = pltpu.PrefetchScalarGridSpec(
            num_scalar_prefetch=0,
            grid=(nb,),
            in_specs=[
                pl.BlockSpec((TB, S_pad, H), lambda b: (b, 0, 0)),            # x slab (bf16)
                pl.BlockSpec((H, H), lambda b: (0, 0), **w1_kwargs),          # W1 (constant)
                pl.BlockSpec((1, H), lambda b: (0, 0)),                       # b1
                pl.BlockSpec((1, H), lambda b: (0, 0)),                       # W2 as a row
                pl.BlockSpec((1, 1), lambda b: (0, 0)),                       # b2
            ],
            out_specs=[
                pl.BlockSpec((TB, H), lambda b: (b, 0)),                      # context
                pl.BlockSpec((TB, S_pad), lambda b: (b, 0)),                  # attn (lane-dense)
            ],
        )
        return pl.pallas_call(
            kernel,
            out_shape=out_shapes,
            grid_spec=grid_spec,
            compiler_params=pltpu.CompilerParams(
                dimension_semantics=("parallel",),
                vmem_limit_bytes=vmem_limit,
            ),
        )(x, w1_bf, b1_2d, w2_row, b2_2d)

    try:
        ctx_pad, attn_pad = _run(single_buffer_w1=True)
    except Exception:
        # TODO(synk): drop this fallback once pl.Buffered(1) is confirmed on all targets.
        ctx_pad, attn_pad = _run(single_buffer_w1=False)

    ctx = ctx_pad[:B]
    attn = attn_pad[:B, :S, None]   # caller-side trailing axis to match (B, S, 1)
    return ctx, attn


# --------------------------------------------------------------------------------------
# Pure-JAX reference (matches the PyTorch module semantics, f32)
# --------------------------------------------------------------------------------------
def _reference(hidden_states, w1, b1, w2, b2):
    scores = jnp.tanh(hidden_states @ w1 + b1) @ w2 + b2      # (B, S, 1)
    attn = jax.nn.softmax(scores, axis=1)                      # softmax over seq
    ctx = jnp.sum(hidden_states * attn, axis=1)                # (B, H)
    return ctx, attn


if __name__ == "__main__":
    B, S, H = 2, 8, 32
    key = jax.random.PRNGKey(0)
    k_x, k_w1, k_b1, k_w2, k_b2 = jax.random.split(key, 5)

    hidden_states = jax.random.normal(k_x, (B, S, H), dtype=jnp.float32)

    # Deterministic parameter init (shapes from nn.Linear(H, H) and nn.Linear(H, 1)),
    # stored as (in_features, out_features) so the math is x @ W + b.
    scale1 = 1.0 / jnp.sqrt(jnp.float32(H))
    w1 = jax.random.uniform(k_w1, (H, H), jnp.float32, -scale1, scale1)
    b1 = jax.random.uniform(k_b1, (H,), jnp.float32, -scale1, scale1)
    w2 = jax.random.uniform(k_w2, (H, 1), jnp.float32, -scale1, scale1)
    b2 = jax.random.uniform(k_b2, (1,), jnp.float32, -scale1, scale1)

    ctx, attn = attention_layer(hidden_states, w1, b1, w2, b2)
    jax.block_until_ready((ctx, attn))

    ctx_ref, attn_ref = _reference(hidden_states, w1, b1.reshape(1, H), w2, b2.reshape(1, 1))
    assert ctx.shape == (B, H) and attn.shape == (B, S, 1)
    # bf16 x / bf16 W1 (and bf16 tanh on v6e/v7x) + approx reciprocal -> loosened tolerance
    # vs. the f32 reference.  Note: approx reciprocal means attn sums to 1 only to ~1e-3.
    assert jnp.allclose(ctx, ctx_ref, atol=3e-2, rtol=3e-2)
    assert jnp.allclose(attn, attn_ref, atol=3e-2, rtol=3e-2)

    print("KERNEL_OK")
</pallas_src>

<mosaic_0001>
module attributes {stable_mosaic.version = 11 : i64} {
  func.func @_attention_kernel(%arg0: i32, %arg1: memref<8x8x32xbf16, #tpu.memory_space<vmem>>, %arg2: memref<32x32xbf16, #tpu.memory_space<vmem>>, %arg3: memref<1x32xf32, #tpu.memory_space<vmem>>, %arg4: memref<1x32xf32, #tpu.memory_space<vmem>>, %arg5: memref<1x1xf32, #tpu.memory_space<vmem>>, %arg6: memref<8x32xf32, #tpu.memory_space<vmem>>, %arg7: memref<8x8xf32, #tpu.memory_space<vmem>>) attributes {dimension_semantics = [#tpu.dimension_semantics<parallel>], iteration_bounds = array<i64: 1>, scalar_prefetch = 0 : i64, scratch_operands = 0 : i64, tpu.core_type = #tpu.core_type<tc>, window_params = [{transform_indices = @transform_0, window_bounds = array<i64: 8, 8, 32>}, {pipeline_mode = #tpu.pipeline_mode<synchronous>, transform_indices = @transform_1, window_bounds = array<i64: 32, 32>}, {pipeline_mode = #tpu.pipeline_mode<synchronous>, transform_indices = @transform_2, window_bounds = array<i64: 1, 32>}, {pipeline_mode = #tpu.pipeline_mode<synchronous>, transform_indices = @transform_3, window_bounds = array<i64: 1, 32>}, {pipeline_mode = #tpu.pipeline_mode<synchronous>, transform_indices = @transform_4, window_bounds = array<i64: 1, 1>}, {transform_indices = @transform_5, window_bounds = array<i64: 8, 32>}, {transform_indices = @transform_6, window_bounds = array<i64: 8, 8>}]} {
    %c0 = arith.constant 0 : index
    %c0_0 = arith.constant 0 : index
    %c0_1 = arith.constant 0 : index
    %0 = vector.load %arg1[%c0, %c0_0, %c0_1] : memref<8x8x32xbf16, #tpu.memory_space<vmem>>, vector<8x8x32xbf16>
    %1 = vector.shape_cast %0 : vector<8x8x32xbf16> to vector<64x32xbf16>
    %c0_2 = arith.constant 0 : index
    %c0_3 = arith.constant 0 : index
    %2 = vector.load %arg2[%c0_2, %c0_3] : memref<32x32xbf16, #tpu.memory_space<vmem>>, vector<32x32xbf16>
    %cst = arith.constant dense<0.000000e+00> : vector<64x32xf32>
    %3 = tpu.matmul %1, %2, %cst {dimension_numbers = #tpu.dot_dimension_numbers<[1], [0], [0], [1], [0, 0, 1, 1], [], []>} : vector<64x32xbf16>, vector<32x32xbf16>, vector<64x32xf32> -> vector<64x32xf32>
    %c0_4 = arith.constant 0 : index
    %c0_5 = arith.constant 0 : index
    %4 = vector.load %arg3[%c0_4, %c0_5] : memref<1x32xf32, #tpu.memory_space<vmem>>, vector<1x32xf32>
    %5 = vector.broadcast %4 : vector<1x32xf32> to vector<64x32xf32>
    %6 = arith.addf %3, %5 : vector<64x32xf32>
    %7 = arith.truncf %6 : vector<64x32xf32> to vector<64x32xbf16>
    %8 = math.tanh %7 : vector<64x32xbf16>
    %c0_6 = arith.constant 0 : index
    %c0_7 = arith.constant 0 : index
    %9 = vector.load %arg4[%c0_6, %c0_7] : memref<1x32xf32, #tpu.memory_space<vmem>>, vector<1x32xf32>
    %10 = arith.extf %8 : vector<64x32xbf16> to vector<64x32xf32>
    %11 = vector.broadcast %9 : vector<1x32xf32> to vector<64x32xf32>
    %12 = arith.mulf %10, %11 : vector<64x32xf32>
    %cst_8 = arith.constant dense<0.000000e+00> : vector<64xf32>
    %13 = vector.multi_reduction <add>, %12, %cst_8 [1] : vector<64x32xf32> to vector<64xf32>
    %14 = vector.shape_cast %13 : vector<64xf32> to vector<64x1xf32>
    %c0_9 = arith.constant 0 : index
    %c0_10 = arith.constant 0 : index
    %15 = vector.load %arg5[%c0_9, %c0_10] : memref<1x1xf32, #tpu.memory_space<vmem>>, vector<1x1xf32>
    %16 = vector.broadcast %15 : vector<1x1xf32> to vector<64x1xf32>
    %17 = arith.addf %14, %16 : vector<64x1xf32>
    %18 = vector.shape_cast %17 : vector<64x1xf32> to vector<8x8xf32>
    %cst_11 = arith.constant dense<0xFF800000> : vector<8xf32>
    %19 = vector.multi_reduction <maximumf>, %18, %cst_11 [1] : vector<8x8xf32> to vector<8xf32>
    %20 = vector.shape_cast %19 : vector<8xf32> to vector<8x1xf32>
    %21 = vector.broadcast %20 : vector<8x1xf32> to vector<8x8xf32>
    %22 = arith.subf %18, %21 : vector<8x8xf32>
    %23 = math.exp %22 : vector<8x8xf32>
    %cst_12 = arith.constant dense<0.000000e+00> : vector<8xf32>
    %24 = vector.multi_reduction <add>, %23, %cst_12 [1] : vector<8x8xf32> to vector<8xf32>
    %25 = vector.shape_cast %24 : vector<8xf32> to vector<8x1xf32>
    %26 = tpu.reciprocal %25 {approx = true} : vector<8x1xf32> -> vector<8x1xf32>
    %27 = vector.broadcast %26 : vector<8x1xf32> to vector<8x8xf32>
    %28 = arith.mulf %23, %27 : vector<8x8xf32>
    %c0_13 = arith.constant 0 : index
    %c0_14 = arith.constant 0 : index
    %29 = vector.load %arg7[%c0_13, %c0_14] : memref<8x8xf32, #tpu.memory_space<vmem>>, vector<8x8xf32>
    tpu.vector_store %arg7[%c0_13, %c0_14], %28 {strides = array<i32>} : memref<8x8xf32, #tpu.memory_space<vmem>>, vector<8x8xf32>,
    %c0_15 = arith.constant 0 : index
    %c0_16 = arith.constant 0 : index
    %c0_17 = arith.constant 0 : index
    %30 = vector.load %arg1[%c0_15, %c0_16, %c0_17] : memref<8x8x32xbf16, #tpu.memory_space<vmem>>, vector<8x8x32xbf16>
    %31 = vector.shape_cast %28 : vector<8x8xf32> to vector<8x8x1xf32>
    %32 = arith.extf %30 : vector<8x8x32xbf16> to vector<8x8x32xf32>
    %33 = vector.broadcast %31 : vector<8x8x1xf32> to vector<8x8x32xf32>
    %34 = arith.mulf %32, %33 : vector<8x8x32xf32>
    %cst_18 = arith.constant dense<0.000000e+00> : vector<8x32xf32>
    %35 = vector.multi_reduction <add>, %34, %cst_18 [1] : vector<8x8x32xf32> to vector<8x32xf32>
    %c0_19 = arith.constant 0 : index
    %c0_20 = arith.constant 0 : index
    %36 = vector.load %arg6[%c0_19, %c0_20] : memref<8x32xf32, #tpu.memory_space<vmem>>, vector<8x32xf32>
    tpu.vector_store %arg6[%c0_19, %c0_20], %35 {strides = array<i32>} : memref<8x32xf32, #tpu.memory_space<vmem>>, vector<8x32xf32>,
    return
  }
  func.func @transform_0(%arg0: i32) -> (i32, i32, i32) {
    %c0_i32 = arith.constant 0 : i32
    %c0_i32_0 = arith.constant 0 : i32
    %c0_i32_1 = arith.constant 0 : i32
    return %arg0, %c0_i32, %c0_i32_0 : i32, i32, i32
  }
  func.func @transform_1(%arg0: i32) -> (i32, i32) {
    %c0_i32 = arith.constant 0 : i32
    %c0_i32_0 = arith.constant 0 : i32
    %c0_i32_1 = arith.constant 0 : i32
    return %c0_i32, %c0_i32_0 : i32, i32
  }
  func.func @transform_2(%arg0: i32) -> (i32, i32) {
    %c0_i32 = arith.constant 0 : i32
    %c0_i32_0 = arith.constant 0 : i32
    %c0_i32_1 = arith.constant 0 : i32
    return %c0_i32, %c0_i32_0 : i32, i32
  }
  func.func @transform_3(%arg0: i32) -> (i32, i32) {
    %c0_i32 = arith.constant 0 : i32
    %c0_i32_0 = arith.constant 0 : i32
    %c0_i32_1 = arith.constant 0 : i32
    return %c0_i32, %c0_i32_0 : i32, i32
  }
  func.func @transform_4(%arg0: i32) -> (i32, i32) {
    %c0_i32 = arith.constant 0 : i32
    %c0_i32_0 = arith.constant 0 : i32
    %c0_i32_1 = arith.constant 0 : i32
    return %c0_i32, %c0_i32_0 : i32, i32
  }
  func.func @transform_5(%arg0: i32) -> (i32, i32) {
    %c0_i32 = arith.constant 0 : i32
    %c0_i32_0 = arith.constant 0 : i32
    return %arg0, %c0_i32 : i32, i32
  }
  func.func @transform_6(%arg0: i32) -> (i32, i32) {
    %c0_i32 = arith.constant 0 : i32
    %c0_i32_0 = arith.constant 0 : i32
    return %arg0, %c0_i32 : i32, i32
  }
}

module attributes {stable_mosaic.version = 11 : i64} {
  func.func @_attention_kernel(%arg0: i32, %arg1: memref<8x8x32xbf16, #tpu.memory_space<vmem>>, %arg2: memref<32x32xbf16, #tpu.memory_space<vmem>>, %arg3: memref<1x32xf32, #tpu.memory_space<vmem>>, %arg4: memref<1x32xf32, #tpu.memory_space<vmem>>, %arg5: memref<1x1xf32, #tpu.memory_space<vmem>>, %arg6: memref<8x32xf32, #tpu.memory_space<vmem>>, %arg7: memref<8x8xf32, #tpu.memory_space<vmem>>) attributes {dimension_semantics = [#tpu.dimension_semantics<parallel>], iteration_bounds = array<i64: 1>, scalar_prefetch = 0 : i64, scratch_operands = 0 : i64, tpu.core_type = #tpu.core_type<tc>, window_params = [{transform_indices = @transform_0, window_bounds = array<i64: 8, 8, 32>}, {pipeline_mode = #tpu.pipeline_mode<synchronous>, transform_indices = @transform_1, window_bounds = array<i64: 32, 32>}, {pipeline_mode = #tpu.pipeline_mode<synchronous>, transform_indices = @transform_2, window_bounds = array<i64: 1, 32>}, {pipeline_mode = #tpu.pipeline_mode<synchronous>, transform_indices = @transform_3, window_bounds = array<i64: 1, 32>}, {pipeline_mode = #tpu.pipeline_mode<synchronous>, transform_indices = @transform_4, window_bounds = array<i64: 1, 1>}, {transform_indices = @transform_5, window_bounds = array<i64: 8, 32>}, {transform_indices = @transform_6, window_bounds = array<i64: 8, 8>}]} {
    %c0 = arith.constant 0 : index
    %c0_0 = arith.constant 0 : index
    %c0_1 = arith.constant 0 : index
    %0 = vector.load %arg1[%c0, %c0_0, %c0_1] : memref<8x8x32xbf16, #tpu.memory_space<vmem>>, vector<8x8x32xbf16>
    %1 = vector.shape_cast %0 : vector<8x8x32xbf16> to vector<64x32xbf16>
    %c0_2 = arith.constant 0 : index
    %c0_3 = arith.constant 0 : index
    %2 = vector.load %arg2[%c0_2, %c0_3] : memref<32x32xbf16, #tpu.memory_space<vmem>>, vector<32x32xbf16>
    %cst = arith.constant dense<0.000000e+00> : vector<64x32xf32>
    %3 = tpu.matmul %1, %2, %cst {dimension_numbers = #tpu.dot_dimension_numbers<[1], [0], [0], [1], [0, 0, 1, 1], [], []>} : vector<64x32xbf16>, vector<32x32xbf16>, vector<64x32xf32> -> vector<64x32xf32>
    %c0_4 = arith.constant 0 : index
    %c0_5 = arith.constant 0 : index
    %4 = vector.load %arg3[%c0_4, %c0_5] : memref<1x32xf32, #tpu.memory_space<vmem>>, vector<1x32xf32>
    %5 = vector.broadcast %4 : vector<1x32xf32> to vector<64x32xf32>
    %6 = arith.addf %3, %5 : vector<64x32xf32>
    %7 = arith.truncf %6 : vector<64x32xf32> to vector<64x32xbf16>
    %8 = math.tanh %7 : vector<64x32xbf16>
    %c0_6 = arith.constant 0 : index
    %c0_7 = arith.constant 0 : index
    %9 = vector.load %arg4[%c0_6, %c0_7] : memref<1x32xf32, #tpu.memory_space<vmem>>, vector<1x32xf32>
    %10 = arith.extf %8 : vector<64x32xbf16> to vector<64x32xf32>
    %11 = vector.broadcast %9 : vector<1x32xf32> to vector<64x32xf32>
    %12 = arith.mulf %10, %11 : vector<64x32xf32>
    %cst_8 = arith.constant dense<0.000000e+00> : vector<64xf32>
    %13 = vector.multi_reduction <add>, %12, %cst_8 [1] : vector<64x32xf32> to vector<64xf32>
    %14 = vector.shape_cast %13 : vector<64xf32> to vector<64x1xf32>
    %c0_9 = arith.constant 0 : index
    %c0_10 = arith.constant 0 : index
    %15 = vector.load %arg5[%c0_9, %c0_10] : memref<1x1xf32, #tpu.memory_space<vmem>>, vector<1x1xf32>
    %16 = vector.broadcast %15 : vector<1x1xf32> to vector<64x1xf32>
    %17 = arith.addf %14, %16 : vector<64x1xf32>
    %18 = vector.shape_cast %17 : vector<64x1xf32> to vector<8x8xf32>
    %cst_11 = arith.constant dense<0xFF800000> : vector<8xf32>
    %19 = vector.multi_reduction <maximumf>, %18, %cst_11 [1] : vector<8x8xf32> to vector<8xf32>
    %20 = vector.shape_cast %19 : vector<8xf32> to vector<8x1xf32>
    %21 = vector.broadcast %20 : vector<8x1xf32> to vector<8x8xf32>
    %22 = arith.subf %18, %21 : vector<8x8xf32>
    %23 = math.exp %22 : vector<8x8xf32>
    %cst_12 = arith.constant dense<0.000000e+00> : vector<8xf32>
    %24 = vector.multi_reduction <add>, %23, %cst_12 [1] : vector<8x8xf32> to vector<8xf32>
    %25 = vector.shape_cast %24 : vector<8xf32> to vector<8x1xf32>
    %26 = tpu.reciprocal %25 {approx = true} : vector<8x1xf32> -> vector<8x1xf32>
    %27 = vector.broadcast %26 : vector<8x1xf32> to vector<8x8xf32>
    %28 = arith.mulf %23, %27 : vector<8x8xf32>
    %c0_13 = arith.constant 0 : index
    %c0_14 = arith.constant 0 : index
    %29 = vector.load %arg7[%c0_13, %c0_14] : memref<8x8xf32, #tpu.memory_space<vmem>>, vector<8x8xf32>
    tpu.vector_store %arg7[%c0_13, %c0_14], %28 {strides = array<i32>} : memref<8x8xf32, #tpu.memory_space<vmem>>, vector<8x8xf32>,
    %c0_15 = arith.constant 0 : index
    %c0_16 = arith.constant 0 : index
    %c0_17 = arith.constant 0 : index
    %30 = vector.load %arg1[%c0_15, %c0_16, %c0_17] : memref<8x8x32xbf16, #tpu.memory_space<vmem>>, vector<8x8x32xbf16>
    %31 = vector.shape_cast %28 : vector<8x8xf32> to vector<8x8x1xf32>
    %32 = arith.extf %30 : vector<8x8x32xbf16> to vector<8x8x32xf32>
    %33 = vector.broadcast %31 : vector<8x8x1xf32> to vector<8x8x32xf32>
    %34 = arith.mulf %32, %33 : vector<8x8x32xf32>
    %cst_18 = arith.constant dense<0.000000e+00> : vector<8x32xf32>
    %35 = vector.multi_reduction <add>, %34, %cst_18 [1] : vector<8x8x32xf32> to vector<8x32xf32>
    %c0_19 = arith.constant 0 : index
    %c0_20 = arith.constant 0 : index
    %36 = vector.load %arg6[%c0_19, %c0_20] : memref<8x32xf32, #tpu.memory_space<vmem>>, vector<8x32xf32>
    tpu.vector_store %arg6[%c0_19, %c0_20], %35 {strides = array<i32>} : memref<8x32xf32, #tpu.memory_space<vmem>>, vector<8x32xf32>,
    return
  }
  func.func @transform_0(%arg0: i32) -> (i32, i32, i32) {
    %c0_i32 = arith.constant 0 : i32
    %c0_i32_0 = arith.constant 0 : i32
    %c0_i32_1 = arith.constant 0 : i32
    return %arg0, %c0_i32, %c0_i32_0 : i32, i32, i32
  }
  func.func @transform_1(%arg0: i32) -> (i32, i32) {
    %c0_i32 = arith.constant 0 : i32
    %c0_i32_0 = arith.constant 0 : i32
    %c0_i32_1 = arith.constant 0 : i32
    return %c0_i32, %c0_i32_0 : i32, i32
  }
  func.func @transform_2(%arg0: i32) -> (i32, i32) {
    %c0_i32 = arith.constant 0 : i32
    %c0_i32_0 = arith.constant 0 : i32
    %c0_i32_1 = arith.constant 0 : i32
    return %c0_i32, %c0_i32_0 : i32, i32
  }
  func.func @transform_3(%arg0: i32) -> (i32, i32) {
    %c0_i32 = arith.constant 0 : i32
    %c0_i32_0 = arith.constant 0 : i32
    %c0_i32_1 = arith.constant 0 : i32
    return %c0_i32, %c0_i32_0 : i32, i32
  }
  func.func @transform_4(%arg0: i32) -> (i32, i32) {
    %c0_i32 = arith.constant 0 : i32
    %c0_i32_0 = arith.constant 0 : i32
    %c0_i32_1 = arith.constant 0 : i32
    return %c0_i32, %c0_i32_0 : i32, i32
  }
  func.func @transform_5(%arg0: i32) -> (i32, i32) {
    %c0_i32 = arith.constant 0 : i32
    %c0_i32_0 = arith.constant 0 : i32
    return %arg0, %c0_i32 : i32, i32
  }
  func.func @transform_6(%arg0: i32) -> (i32, i32) {
    %c0_i32 = arith.constant 0 : i32
    %c0_i32_0 = arith.constant 0 : i32
    return %arg0, %c0_i32 : i32, i32
  }
}

</mosaic_0001>

<llo_original>
// kernel: tpu_custom_call.1
$region0: #{tpu_custom_call.1}
  #allocation0 [shape = 'u32[]', space=smem, size = 0x4, offset = 0x4, fixed_abs, tag = 'smem constant byte address 0x4 - core index']
  #allocation1 [shape = 'u32[144,128]{1,0:T(1,128)}', space=vmem, size = 0x12000, scoped, tag = 'internal scratch']
  #allocation2 [shape = 'f32[1,1]{1,0:T(1,128)S(1)}', space=vmem, size = 0x200, scoped, tag = 'scoped memory for tpu_custom_call.1']
  %s0 = inlined_call_operand.hbm [shape: bf16[8,8,32], index: 0, kind: input, shape index: {}]
  %s1 = inlined_call_operand.hbm [shape: bf16[32,32], index: 1, kind: input, shape index: {}]
  %s2 = inlined_call_operand.vmem [shape: f32[1,32], index: 2, kind: input, shape index: {}]
  %s3 = inlined_call_operand.vmem [shape: f32[1,32], index: 3, kind: input, shape index: {}]
  %s4 = inlined_call_operand.<no memory space> [shape: f32[1,1], index: 4, kind: input, shape index: {}]
  %s5 = inlined_call_operand.hbm [shape: f32[8,32], index: 5, kind: output, shape index: {0}]
  %s6 = inlined_call_operand.hbm [shape: f32[8,8], index: 6, kind: output, shape index: {1}]
  %7 = xla_tuple %s5, %s6
  %s8 = sld [smem:[#allocation0]]
  $region46: #{tpu_custom_call.1} parent=0
    _
  %s10 = ssub.s32 1, %s8
  %s11 = scalar_select 0, %s10, %s8
  %v12 = vstv %s4
  %13 = vst [vmem:[#allocation2] sm:$0x1] %v12
  $region1: #{tpu_custom_call.1} parent=0
    #allocation3 [shape = 'u8[16384]{0}', space=vmem, size = 0x4000, scoped, tag = 'input window, operand 0, single buffered']
    #allocation4 [shape = 's32[1]{0}', space=sflag, size = 0x4, scoped, tag = 'scoped memory for tpu_custom_call.1']
    #allocation5 [shape = 's32[1]{0}', space=sflag, size = 0x4, scoped, tag = 'scoped memory for tpu_custom_call.1']
    #allocation6 [shape = 'u8[8192]{0}', space=vmem, size = 0x2000, scoped, tag = 'input window, operand 1, single buffered']
    #allocation7 [shape = 's32[1]{0}', space=sflag, size = 0x4, scoped, tag = 'scoped memory for tpu_custom_call.1']
    #allocation8 [shape = 'u8[4096]{0}', space=vmem, size = 0x1000, scoped, tag = 'output window, operand 0, single buffered']
    #allocation9 [shape = 'u8[4096]{0}', space=vmem, size = 0x1000, scoped, tag = 'output window, operand 1, single buffered']
    #allocation10 [shape = 's32[1]{0}', space=sflag, size = 0x4, scoped, tag = 'scoped memory for tpu_custom_call.1']
    %14 = vsyncpa [#allocation4], 0
    %15 = vsyncpa [#allocation7], 0
    %16 = vsyncpa [#allocation5], 0
    %17 = vsyncpa [#allocation10], 0
    // Predicated region
    $region2: #{tpu_custom_call.1} parent=1 // pred_check
      _
    $region3: #{tpu_custom_call.1} parent=1 // pred_check_branch
      %19 = sbr.rel (0) target = $region5
    $region4: #{tpu_custom_call.1} parent=1 // pred_region
      %s21 = ssub.s32 512, 512
      %22 = vsyncadd [#allocation4], %s21
      %s23 = sshll.u32 [#allocation3], 4
      %s24 = int_to_ptr.vmem [resolvable:$true] %s23
      %29 = dma.hbm_to_vmem [thread:$0]  %s0, 512, %s24, [#allocation4], 64, 64, 4
    $region5: #{tpu_custom_call.1} parent=1 // pred_fallthru
      _
    // Predicated region
    $region6: #{tpu_custom_call.1} parent=1 // pred_check
      _
    $region7: #{tpu_custom_call.1} parent=1 // pred_check_branch
      %31 = sbr.rel (0) target = $region9
    $region8: #{tpu_custom_call.1} parent=1 // pred_region
      %s33 = ssub.s32 256, 256
      %34 = vsyncadd [#allocation7], %s33
      %s35 = sshll.u32 [#allocation6], 4
      %s36 = int_to_ptr.vmem [resolvable:$true] %s35
      %41 = dma.hbm_to_vmem [thread:$0]  %s1, 256, %s36, [#allocation7], 64, 64, 4
    $region9: #{tpu_custom_call.1} parent=1 // pred_fallthru
      _
    // Predicated region
    $region10: #{tpu_custom_call.1} parent=1 // pred_check
      _
    $region11: #{tpu_custom_call.1} parent=1 // pred_check_branch
      %43 = sbr.rel (0) target = $region13
    $region12: #{tpu_custom_call.1} parent=1 // pred_region
      _
    $region13: #{tpu_custom_call.1} parent=1 // pred_fallthru
      _
    // Predicated region
    $region14: #{tpu_custom_call.1} parent=1 // pred_check
      _
    $region15: #{tpu_custom_call.1} parent=1 // pred_check_branch
      %45 = sbr.rel (0) target = $region17
    $region16: #{tpu_custom_call.1} parent=1 // pred_region
      _
    $region17: #{tpu_custom_call.1} parent=1 // pred_fallthru
      _
    // Predicated region
    $region18: #{tpu_custom_call.1} parent=1 // pred_check
      _
    $region19: #{tpu_custom_call.1} parent=1 // pred_check_branch
      %47 = sbr.rel (0) target = $region21
    $region20: #{tpu_custom_call.1} parent=1 // pred_region
      _
    $region21: #{tpu_custom_call.1} parent=1 // pred_fallthru
      _
    // Predicated region
    $region22: #{tpu_custom_call.1} parent=1 // pred_check
      _
    $region23: #{tpu_custom_call.1} parent=1 // pred_check_branch
      %49 = sbr.rel (0) target = $region25
    $region24: #{tpu_custom_call.1} parent=1 // pred_region
      %50 = dma.done [#allocation4], 512
    $region25: #{tpu_custom_call.1} parent=1 // pred_fallthru
      _
    // Predicated region
    $region26: #{tpu_custom_call.1} parent=1 // pred_check
      _
    $region27: #{tpu_custom_call.1} parent=1 // pred_check_branch
      %52 = sbr.rel (0) target = $region29
    $region28: #{tpu_custom_call.1} parent=1 // pred_region
      %53 = dma.done [#allocation7], 256
    $region29: #{tpu_custom_call.1} parent=1 // pred_fallthru
      _
    %v55 = vld [vmem:[#allocation3] sm:$0xf]
    %v56 = vld [vmem:[#allocation3 + $0x4] sm:$0xf]
    %v57 = vld [vmem:[#allocation3 + $0x8] sm:$0xf]
    %v58 = vld [vmem:[#allocation3 + $0xc] sm:$0xf]
    %v59 = vld [vmem:[#allocation3 + $0x10] sm:$0xf]
    %v60 = vld [vmem:[#allocation3 + $0x14] sm:$0xf]
    %v61 = vld [vmem:[#allocation3 + $0x18] sm:$0xf]
    %v62 = vld [vmem:[#allocation3 + $0x1c] sm:$0xf]
    %v63 = vld [vmem:[#allocation6] sm:$0xf]
    %v64 = vld [vmem:[#allocation6 + $0x4] sm:$0xf]
    %v65 = vld [vmem:[#allocation6 + $0x8] sm:$0xf]
    %v66 = vld [vmem:[#allocation6 + $0xc] sm:$0xf]
    %v67 = vld [vmem:[%s2] sm:$0x1]
    %v69 = vlaneseq
    %v70 = vshrl.u32 %v69, 7
    %v71 = vsub.s32 0, %v70
    %v72 = vrot.slane %v67, %v71
    %v82 = vunpack.c.l.b16 %v55
    %v83 = vunpack.c.l.b16 %v56
    %v84 = vunpack.c.l.b16 %v57
    %v85 = vunpack.c.l.b16 %v58
    %v86 = vunpack.c.l.b16 %v59
    %v87 = vunpack.c.l.b16 %v60
    %v88 = vunpack.c.l.b16 %v61
    %v89 = vunpack.c.l.b16 %v62
    %v90 = vpack.c.b16 %v83, %v82
    %v91 = vpack.c.b16 %v85, %v84
    %v92 = vpack.c.b16 %v87, %v86
    %v93 = vpack.c.b16 %v89, %v88
    %v98 = vunpack.c.l.b16 %v63
    %v99 = vunpack.c.l.b16 %v64
    %v100 = vunpack.c.l.b16 %v65
    %v101 = vunpack.c.l.b16 %v66
    %v102 = vpack.c.b16 %v99, %v98
    %v103 = vpack.c.b16 %v101, %v100
    %vm106 = vcmask 261120
    %v108 = vsel %vm106, %v90, 0
    %v111 = vsel %vm106, %v91, 0
    %v114 = vsel %vm106, %v92, 0
    %v117 = vsel %vm106, %v93, 0
    %119 = vmatprep.subr.bf16.mxu0 0
    %120 = vmatpush1.bf16.msra.mxu0 0
    %121 = vmatprep.subr.bf16.mxu0 0
    %122 = vmatpush1.bf16.msra.mxu0 0
    %123 = vmatprep.subr.bf16.mxu0 0
    %124 = vmatpush1.bf16.msra.mxu0 0
    %125 = vmatprep.subr.bf16.mxu0 0
    %126 = vmatpush1.bf16.msra.mxu0 0
    %127 = vmatprep.subr.bf16.mxu0 0
    %128 = vmatpush1.bf16.msra.mxu0 0
    %129 = vmatprep.subr.bf16.mxu0 0
    %130 = vmatpush1.bf16.msra.mxu0 0
    %131 = vmatprep.subr.bf16.mxu0 0
    %132 = vmatpush1.bf16.msra.mxu0 %v103
    %133 = vmatprep.subr.bf16.mxu0 0
    %134 = vmatpush1.bf16.msra.mxu0 %v102
    %135 = vmatprep.subr.bf16.mxu0 0
    %136 = vmatpush2.bf16.msra.mxu0 0
    %137 = vmatprep.subr.bf16.mxu0 0
    %138 = vmatpush2.bf16.msra.mxu0 0
    %139 = vmatprep.subr.bf16.mxu0 0
    %140 = vmatpush2.bf16.msra.mxu0 0
    %141 = vmatprep.subr.bf16.mxu0 0
    %142 = vmatpush2.bf16.msra.mxu0 0
    %143 = vmatprep.subr.bf16.mxu0 0
    %144 = vmatpush2.bf16.msra.mxu0 0
    %145 = vmatprep.subr.bf16.mxu0 0
    %146 = vmatpush2.bf16.msra.mxu0 0
    %147 = vmatprep.subr.bf16.mxu0 0
    %148 = vmatpush2.bf16.msra.mxu0 0
    %149 = vmatprep.subr.bf16.mxu0 0
    %150 = vmatpush2.bf16.msra.mxu0 0
    %151 = vmatprep.mubr.bf16.mxu0 0
    %152 = vmatmul.mubr.bf16.gmra.mxu0 %v108
    %v153 = vpop.f32.mrf.mxu0
    %v154 = vadd.f32 %v72, %v153
    %v155 = vpop.f32.mrf.mxu0
    %v156 = vpop.f32.mrf.mxu0
    %v157 = vadd.f32 %v72, %v156
    %v158 = vpop.f32.mrf.mxu0
    %159 = vmatprep.mubr.bf16.mxu0 0
    %160 = vmatmul.mubr.bf16.gmra.mxu0 %v111
    %v161 = vpop.f32.mrf.mxu0
    %v162 = vadd.f32 %v72, %v161
    %v163 = vpop.f32.mrf.mxu0
    %v164 = vpop.f32.mrf.mxu0
    %v165 = vadd.f32 %v72, %v164
    %v166 = vpop.f32.mrf.mxu0
    %167 = vmatprep.mubr.bf16.mxu0 0
    %168 = vmatmul.mubr.bf16.gmra.mxu0 %v114
    %v169 = vpop.f32.mrf.mxu0
    %v170 = vadd.f32 %v72, %v169
    %v171 = vpop.f32.mrf.mxu0
    %v172 = vpop.f32.mrf.mxu0
    %v173 = vadd.f32 %v72, %v172
    %v174 = vpop.f32.mrf.mxu0
    %175 = vmatprep.mubr.bf16.mxu0 0
    %176 = vmatmul.mubr.bf16.gmra.mxu0 %v117
    %v177 = vpop.f32.mrf.mxu0
    %v178 = vadd.f32 %v72, %v177
    %v179 = vpop.f32.mrf.mxu0
    %v180 = vpop.f32.mrf.mxu0
    %v181 = vadd.f32 %v72, %v180
    %v182 = vpop.f32.mrf.mxu0
    %183 = vdwg.mxu0
    %v184 = vpack.c.bf16 %v157, %v154
    %v185 = vpack.c.bf16 %v165, %v162
    %v186 = vpack.c.bf16 %v173, %v170
    %v187 = vpack.c.bf16 %v181, %v178
    %v188 = vtanh.bf16.pop %v184
    %v189 = vtanh.bf16.pop %v185
    %v190 = vtanh.bf16.pop %v186
    %v191 = vtanh.bf16.pop %v187
    %v192 = vld [vmem:[%s3] sm:$0x1]
    %v193 = vunpack.c.l.bf16 %v188
    %v194 = vunpack.c.h.bf16 %v188
    %v195 = vunpack.c.l.bf16 %v189
    %v196 = vunpack.c.h.bf16 %v189
    %v197 = vunpack.c.l.bf16 %v190
    %v198 = vunpack.c.h.bf16 %v190
    %v199 = vunpack.c.l.bf16 %v191
    %v200 = vunpack.c.h.bf16 %v191
    %v202 = vlaneseq
    %v203 = vshrl.u32 %v202, 7
    %v204 = vsub.s32 0, %v203
    %v205 = vrot.slane %v192, %v204
    %v207 = vmul.f32 %v193, %v205
    %v208 = vmul.f32 %v194, %v205
    %v209 = vmul.f32 %v195, %v205
    %v210 = vmul.f32 %v196, %v205
    %v211 = vmul.f32 %v197, %v205
    %v212 = vmul.f32 %v198, %v205
    %v213 = vmul.f32 %v199, %v205
    %v214 = vmul.f32 %v200, %v205
    %v215 = vsel %vm106, %v207, 0.0
    %216 = vadd.xlane.f32.xlu0 %v215
    %v217 = vpop.xlane.xlu0 %216
    %v218 = vsel %vm106, %v208, 0.0
    %219 = vadd.xlane.f32.xlu0 %v218
    %v220 = vpop.xlane.xlu0 %219
    %v221 = vsel %vm106, %v209, 0.0
    %222 = vadd.xlane.f32.xlu0 %v221
    %v223 = vpop.xlane.xlu0 %222
    %v224 = vsel %vm106, %v210, 0.0
    %225 = vadd.xlane.f32.xlu0 %v224
    %v226 = vpop.xlane.xlu0 %225
    %v227 = vsel %vm106, %v211, 0.0
    %228 = vadd.xlane.f32.xlu0 %v227
    %v229 = vpop.xlane.xlu0 %228
    %v230 = vsel %vm106, %v212, 0.0
    %231 = vadd.xlane.f32.xlu0 %v230
    %v232 = vpop.xlane.xlu0 %231
    %v233 = vsel %vm106, %v213, 0.0
    %234 = vadd.xlane.f32.xlu0 %v233
    %v235 = vpop.xlane.xlu0 %234
    %v236 = vsel %vm106, %v214, 0.0
    %237 = vadd.xlane.f32.xlu0 %v236
    %v238 = vpop.xlane.xlu0 %237
    %v239 = vld [vmem:[#allocation2] sm:$0x1]
    %v241 = vlaneseq
    %v242 = vshrl.u32 %v241, 7
    %v243 = vsub.s32 0, %v242
    %v244 = vrot.slane %v239, %v243
    %v246 = vadd.f32 %v217, %v244
    %v247 = vadd.f32 %v220, %v244
    %v248 = vadd.f32 %v223, %v244
    %v249 = vadd.f32 %v226, %v244
    %v250 = vadd.f32 %v229, %v244
    %v251 = vadd.f32 %v232, %v244
    %v252 = vadd.f32 %v235, %v244
    %v253 = vadd.f32 %v238, %v244
    %262 = vset.pattern.permute.xlu0 0
    %263 = vperm.xlu0 %262, %v246
    %v264 = vpop.permute.xlu0 %263
    %265 = vset.pattern.permute.xlu0 0
    %266 = vperm.xlu0 %265, %v247
    %v267 = vpop.permute.xlu0 %266
    %268 = vset.pattern.permute.xlu0 0
    %269 = vperm.xlu0 %268, %v248
    %v270 = vpop.permute.xlu0 %269
    %271 = vset.pattern.permute.xlu0 0
    %272 = vperm.xlu0 %271, %v249
    %v273 = vpop.permute.xlu0 %272
    %274 = vset.pattern.permute.xlu0 0
    %275 = vperm.xlu0 %274, %v250
    %v276 = vpop.permute.xlu0 %275
    %277 = vset.pattern.permute.xlu0 0
    %278 = vperm.xlu0 %277, %v251
    %v279 = vpop.permute.xlu0 %278
    %280 = vset.pattern.permute.xlu0 0
    %281 = vperm.xlu0 %280, %v252
    %v282 = vpop.permute.xlu0 %281
    %283 = vset.pattern.permute.xlu0 0
    %284 = vperm.xlu0 %283, %v253
    %v285 = vpop.permute.xlu0 %284
    %v286 = vlaneseq
    %v287 = vand.u32 %v286, 127
    %v288 = vlaneseq
    %v289 = vshrl.u32 %v288, 7
    %v290 = vsub.s32 %v287, %v289
    %v291 = vrot.slane %v264, %v290
    %v292 = vlaneseq
    %v293 = vshrl.u32 %v292, 7
    %v294 = vsub.s32 %v287, %v293
    %v295 = vrot.slane %v267, %v294
    %v296 = vlaneseq
    %v297 = vshrl.u32 %v296, 7
    %v298 = vsub.s32 %v287, %v297
    %v299 = vrot.slane %v270, %v298
    %v300 = vlaneseq
    %v301 = vshrl.u32 %v300, 7
    %v302 = vsub.s32 %v287, %v301
    %v303 = vrot.slane %v273, %v302
    %v304 = vlaneseq
    %v305 = vshrl.u32 %v304, 7
    %v306 = vsub.s32 %v287, %v305
    %v307 = vrot.slane %v276, %v306
    %v308 = vlaneseq
    %v309 = vshrl.u32 %v308, 7
    %v310 = vsub.s32 %v287, %v309
    %v311 = vrot.slane %v279, %v310
    %v312 = vlaneseq
    %v313 = vshrl.u32 %v312, 7
    %v314 = vsub.s32 %v287, %v313
    %v315 = vrot.slane %v282, %v314
    %v316 = vlaneseq
    %v317 = vshrl.u32 %v316, 7
    %v318 = vsub.s32 %v287, %v317
    %v319 = vrot.slane %v285, %v318
    %vm320 = vcmask 1041409
    %v321 = vsel %vm320, %v295, %v291
    %vm322 = vcmask 1042434
    %v323 = vsel %vm322, %v299, %v321
    %vm324 = vcmask 1043459
    %v325 = vsel %vm324, %v303, %v323
    %vm326 = vcmask 1044484
    %v327 = vsel %vm326, %v307, %v325
    %vm328 = vcmask 1045509
    %v329 = vsel %vm328, %v311, %v327
    %vm330 = vcmask 1046534
    %v331 = vsel %vm330, %v315, %v329
    %vm332 = vcmask 1047559
    %v333 = vsel %vm332, %v319, %v331
    %vm335 = vcmask 64512
    %v336 = vsel %vm335, %v333, -inf
    %337 = vmax.xlane.f32.xlu0 %v336
    %v338 = vpop.xlane.xlu0 %337
    %v340 = vlaneseq
    %v341 = vshrl.u32 %v340, 7
    %v342 = vsub.s32 0, %v341
    %v343 = vrot.slane %v338, %v342
    %v344 = vlaneseq
    %v345 = vshrl.u32 %v344, 7
    %v346 = vsub.s32 1, %v345
    %v347 = vrot.slane %v338, %v346
    %v348 = vlaneseq
    %v349 = vshrl.u32 %v348, 7
    %v350 = vsub.s32 2, %v349
    %v351 = vrot.slane %v338, %v350
    %v352 = vlaneseq
    %v353 = vshrl.u32 %v352, 7
    %v354 = vsub.s32 3, %v353
    %v355 = vrot.slane %v338, %v354
    %v356 = vlaneseq
    %v357 = vshrl.u32 %v356, 7
    %v358 = vsub.s32 4, %v357
    %v359 = vrot.slane %v338, %v358
    %v360 = vlaneseq
    %v361 = vshrl.u32 %v360, 7
    %v362 = vsub.s32 5, %v361
    %v363 = vrot.slane %v338, %v362
    %v364 = vlaneseq
    %v365 = vshrl.u32 %v364, 7
    %v366 = vsub.s32 6, %v365
    %v367 = vrot.slane %v338, %v366
    %v368 = vlaneseq
    %v369 = vshrl.u32 %v368, 7
    %v370 = vsub.s32 7, %v369
    %v371 = vrot.slane %v338, %v370
    %v380 = vsub.f32 %v246, %v343
    %v381 = vsub.f32 %v247, %v347
    %v382 = vsub.f32 %v248, %v351
    %v383 = vsub.f32 %v249, %v355
    %v384 = vsub.f32 %v250, %v359
    %v385 = vsub.f32 %v251, %v363
    %v386 = vsub.f32 %v252, %v367
    %v387 = vsub.f32 %v253, %v371
    %v388 = vmul.f32 %v380, 1.442695
    %v389 = vpow.pop %v388
    %v390 = vmul.f32 %v381, 1.442695
    %v391 = vpow.pop %v390
    %v392 = vmul.f32 %v382, 1.442695
    %v393 = vpow.pop %v392
    %v394 = vmul.f32 %v383, 1.442695
    %v395 = vpow.pop %v394
    %v396 = vmul.f32 %v384, 1.442695
    %v397 = vpow.pop %v396
    %v398 = vmul.f32 %v385, 1.442695
    %v399 = vpow.pop %v398
    %v400 = vmul.f32 %v386, 1.442695
    %v401 = vpow.pop %v400
    %v402 = vmul.f32 %v387, 1.442695
    %v403 = vpow.pop %v402
    %412 = vset.pattern.permute.xlu0 0
    %413 = vperm.xlu0 %412, %v389
    %v414 = vpop.permute.xlu0 %413
    %415 = vset.pattern.permute.xlu0 0
    %416 = vperm.xlu0 %415, %v391
    %v417 = vpop.permute.xlu0 %416
    %418 = vset.pattern.permute.xlu0 0
    %419 = vperm.xlu0 %418, %v393
    %v420 = vpop.permute.xlu0 %419
    %421 = vset.pattern.permute.xlu0 0
    %422 = vperm.xlu0 %421, %v395
    %v423 = vpop.permute.xlu0 %422
    %424 = vset.pattern.permute.xlu0 0
    %425 = vperm.xlu0 %424, %v397
    %v426 = vpop.permute.xlu0 %425
    %427 = vset.pattern.permute.xlu0 0
    %428 = vperm.xlu0 %427, %v399
    %v429 = vpop.permute.xlu0 %428
    %430 = vset.pattern.permute.xlu0 0
    %431 = vperm.xlu0 %430, %v401
    %v432 = vpop.permute.xlu0 %431
    %433 = vset.pattern.permute.xlu0 0
    %434 = vperm.xlu0 %433, %v403
    %v435 = vpop.permute.xlu0 %434
    %v436 = vlaneseq
    %v437 = vshrl.u32 %v436, 7
    %v438 = vsub.s32 %v287, %v437
    %v439 = vrot.slane %v414, %v438
    %v440 = vlaneseq
    %v441 = vshrl.u32 %v440, 7
    %v442 = vsub.s32 %v287, %v441
    %v443 = vrot.slane %v417, %v442
    %v444 = vlaneseq
    %v445 = vshrl.u32 %v444, 7
    %v446 = vsub.s32 %v287, %v445
    %v447 = vrot.slane %v420, %v446
    %v448 = vlaneseq
    %v449 = vshrl.u32 %v448, 7
    %v450 = vsub.s32 %v287, %v449
    %v451 = vrot.slane %v423, %v450
    %v452 = vlaneseq
    %v453 = vshrl.u32 %v452, 7
    %v454 = vsub.s32 %v287, %v453
    %v455 = vrot.slane %v426, %v454
    %v456 = vlaneseq
    %v457 = vshrl.u32 %v456, 7
    %v458 = vsub.s32 %v287, %v457
    %v459 = vrot.slane %v429, %v458
    %v460 = vlaneseq
    %v461 = vshrl.u32 %v460, 7
    %v462 = vsub.s32 %v287, %v461
    %v463 = vrot.slane %v432, %v462
    %v464 = vlaneseq
    %v465 = vshrl.u32 %v464, 7
    %v466 = vsub.s32 %v287, %v465
    %v467 = vrot.slane %v435, %v466
    %v468 = vsel %vm320, %v443, %v439
    %v469 = vsel %vm322, %v447, %v468
    %v470 = vsel %vm324, %v451, %v469
    %v471 = vsel %vm326, %v455, %v470
    %v472 = vsel %vm328, %v459, %v471
    %v473 = vsel %vm330, %v463, %v472
    %v474 = vsel %vm332, %v467, %v473
    %v476 = vsel %vm335, %v474, 0.0
    %477 = vadd.xlane.f32.xlu0 %v476
    %v478 = vpop.xlane.xlu0 %477
    %v479 = vrcp.pop %v478
    %v481 = vlaneseq
    %v482 = vshrl.u32 %v481, 7
    %v483 = vsub.s32 0, %v482
    %v484 = vrot.slane %v479, %v483
    %v485 = vlaneseq
    %v486 = vshrl.u32 %v485, 7
    %v487 = vsub.s32 1, %v486
    %v488 = vrot.slane %v479, %v487
    %v489 = vlaneseq
    %v490 = vshrl.u32 %v489, 7
    %v491 = vsub.s32 2, %v490
    %v492 = vrot.slane %v479, %v491
    %v493 = vlaneseq
    %v494 = vshrl.u32 %v493, 7
    %v495 = vsub.s32 3, %v494
    %v496 = vrot.slane %v479, %v495
    %v497 = vlaneseq
    %v498 = vshrl.u32 %v497, 7
    %v499 = vsub.s32 4, %v498
    %v500 = vrot.slane %v479, %v499
    %v501 = vlaneseq
    %v502 = vshrl.u32 %v501, 7
    %v503 = vsub.s32 5, %v502
    %v504 = vrot.slane %v479, %v503
    %v505 = vlaneseq
    %v506 = vshrl.u32 %v505, 7
    %v507 = vsub.s32 6, %v506
    %v508 = vrot.slane %v479, %v507
    %v509 = vlaneseq
    %v510 = vshrl.u32 %v509, 7
    %v511 = vsub.s32 7, %v510
    %v512 = vrot.slane %v479, %v511
    %v521 = vmul.f32 %v389, %v484
    %v522 = vmul.f32 %v391, %v488
    %v523 = vmul.f32 %v393, %v492
    %v524 = vmul.f32 %v395, %v496
    %v525 = vmul.f32 %v397, %v500
    %v526 = vmul.f32 %v399, %v504
    %v527 = vmul.f32 %v401, %v508
    %v528 = vmul.f32 %v403, %v512
    %537 = vset.pattern.permute.xlu0 0
    %538 = vperm.xlu0 %537, %v521
    %v539 = vpop.permute.xlu0 %538
    %540 = vset.pattern.permute.xlu0 0
    %541 = vperm.xlu0 %540, %v522
    %v542 = vpop.permute.xlu0 %541
    %543 = vset.pattern.permute.xlu0 0
    %544 = vperm.xlu0 %543, %v523
    %v545 = vpop.permute.xlu0 %544
    %546 = vset.pattern.permute.xlu0 0
    %547 = vperm.xlu0 %546, %v524
    %v548 = vpop.permute.xlu0 %547
    %549 = vset.pattern.permute.xlu0 0
    %550 = vperm.xlu0 %549, %v525
    %v551 = vpop.permute.xlu0 %550
    %552 = vset.pattern.permute.xlu0 0
    %553 = vperm.xlu0 %552, %v526
    %v554 = vpop.permute.xlu0 %553
    %555 = vset.pattern.permute.xlu0 0
    %556 = vperm.xlu0 %555, %v527
    %v557 = vpop.permute.xlu0 %556
    %558 = vset.pattern.permute.xlu0 0
    %559 = vperm.xlu0 %558, %v528
    %v560 = vpop.permute.xlu0 %559
    %v561 = vlaneseq
    %v562 = vshrl.u32 %v561, 7
    %v563 = vsub.s32 %v287, %v562
    %v564 = vrot.slane %v539, %v563
    %v565 = vlaneseq
    %v566 = vshrl.u32 %v565, 7
    %v567 = vsub.s32 %v287, %v566
    %v568 = vrot.slane %v542, %v567
    %v569 = vlaneseq
    %v570 = vshrl.u32 %v569, 7
    %v571 = vsub.s32 %v287, %v570
    %v572 = vrot.slane %v545, %v571
    %v573 = vlaneseq
    %v574 = vshrl.u32 %v573, 7
    %v575 = vsub.s32 %v287, %v574
    %v576 = vrot.slane %v548, %v575
    %v577 = vlaneseq
    %v578 = vshrl.u32 %v577, 7
    %v579 = vsub.s32 %v287, %v578
    %v580 = vrot.slane %v551, %v579
    %v581 = vlaneseq
    %v582 = vshrl.u32 %v581, 7
    %v583 = vsub.s32 %v287, %v582
    %v584 = vrot.slane %v554, %v583
    %v585 = vlaneseq
    %v586 = vshrl.u32 %v585, 7
    %v587 = vsub.s32 %v287, %v586
    %v588 = vrot.slane %v557, %v587
    %v589 = vlaneseq
    %v590 = vshrl.u32 %v589, 7
    %v591 = vsub.s32 %v287, %v590
    %v592 = vrot.slane %v560, %v591
    %v593 = vsel %vm320, %v568, %v564
    %v594 = vsel %vm322, %v572, %v593
    %v595 = vsel %vm324, %v576, %v594
    %v596 = vsel %vm326, %v580, %v595
    %v597 = vsel %vm328, %v584, %v596
    %v598 = vsel %vm330, %v588, %v597
    %v599 = vsel %vm332, %v592, %v598
    %601 = vst.msk [vmem:[#allocation9] sm:$0xff] %vm335, %v599
    %v602 = vld [vmem:[#allocation3] sm:$0xf]
    %v603 = vld [vmem:[#allocation3 + $0x4] sm:$0xf]
    %v604 = vld [vmem:[#allocation3 + $0x8] sm:$0xf]
    %v605 = vld [vmem:[#allocation3 + $0xc] sm:$0xf]
    %v606 = vld [vmem:[#allocation3 + $0x10] sm:$0xf]
    %v607 = vld [vmem:[#allocation3 + $0x14] sm:$0xf]
    %v608 = vld [vmem:[#allocation3 + $0x18] sm:$0xf]
    %v609 = vld [vmem:[#allocation3 + $0x1c] sm:$0xf]
    %v610 = vunpack.c.l.bf16 %v602
    %v611 = vunpack.c.l.bf16 %v603
    %v612 = vunpack.c.l.bf16 %v604
    %v613 = vunpack.c.l.bf16 %v605
    %v614 = vunpack.c.l.bf16 %v606
    %v615 = vunpack.c.l.bf16 %v607
    %v616 = vunpack.c.l.bf16 %v608
    %v617 = vunpack.c.l.bf16 %v609
    %v626 = vmul.f32 %v610, %v539
    %v627 = vmul.f32 %v611, %v542
    %v628 = vmul.f32 %v612, %v545
    %v629 = vmul.f32 %v613, %v548
    %v630 = vmul.f32 %v614, %v551
    %v631 = vmul.f32 %v615, %v554
    %v632 = vmul.f32 %v616, %v557
    %v633 = vmul.f32 %v617, %v560
    %v634 = vsel %vm106, %v626, 0.0
    %v635 = vrot.slane %v634, 4
    %v636 = vadd.f32 %v634, %v635
    %v637 = vrot.slane %v636, 2
    %v638 = vadd.f32 %v636, %v637
    %v639 = vrot.slane %v638, 1
    %v640 = vadd.f32 %v638, %v639
    %v641 = vsel %vm106, %v627, 0.0
    %v642 = vrot.slane %v641, 4
    %v643 = vadd.f32 %v641, %v642
    %v644 = vrot.slane %v643, 2
    %v645 = vadd.f32 %v643, %v644
    %v646 = vrot.slane %v645, 1
    %v647 = vadd.f32 %v645, %v646
    %v648 = vsel %vm106, %v628, 0.0
    %v649 = vrot.slane %v648, 4
    %v650 = vadd.f32 %v648, %v649
    %v651 = vrot.slane %v650, 2
    %v652 = vadd.f32 %v650, %v651
    %v653 = vrot.slane %v652, 1
    %v654 = vadd.f32 %v652, %v653
    %v655 = vsel %vm106, %v629, 0.0
    %v656 = vrot.slane %v655, 4
    %v657 = vadd.f32 %v655, %v656
    %v658 = vrot.slane %v657, 2
    %v659 = vadd.f32 %v657, %v658
    %v660 = vrot.slane %v659, 1
    %v661 = vadd.f32 %v659, %v660
    %v662 = vsel %vm106, %v630, 0.0
    %v663 = vrot.slane %v662, 4
    %v664 = vadd.f32 %v662, %v663
    %v665 = vrot.slane %v664, 2
    %v666 = vadd.f32 %v664, %v665
    %v667 = vrot.slane %v666, 1
    %v668 = vadd.f32 %v666, %v667
    %v669 = vsel %vm106, %v631, 0.0
    %v670 = vrot.slane %v669, 4
    %v671 = vadd.f32 %v669, %v670
    %v672 = vrot.slane %v671, 2
    %v673 = vadd.f32 %v671, %v672
    %v674 = vrot.slane %v673, 1
    %v675 = vadd.f32 %v673, %v674
    %v676 = vsel %vm106, %v632, 0.0
    %v677 = vrot.slane %v676, 4
    %v678 = vadd.f32 %v676, %v677
    %v679 = vrot.slane %v678, 2
    %v680 = vadd.f32 %v678, %v679
    %v681 = vrot.slane %v680, 1
    %v682 = vadd.f32 %v680, %v681
    %v683 = vsel %vm106, %v633, 0.0
    %v684 = vrot.slane %v683, 4
    %v685 = vadd.f32 %v683, %v684
    %v686 = vrot.slane %v685, 2
    %v687 = vadd.f32 %v685, %v686
    %v688 = vrot.slane %v687, 1
    %v689 = vadd.f32 %v687, %v688
    %v698 = vsel %vm320, %v647, %v640
    %v699 = vsel %vm322, %v654, %v698
    %v700 = vsel %vm324, %v661, %v699
    %v701 = vsel %vm326, %v668, %v700
    %v702 = vsel %vm328, %v675, %v701
    %v703 = vsel %vm330, %v682, %v702
    %v704 = vsel %vm332, %v689, %v703
    %706 = vst.msk [vmem:[#allocation8] sm:$0xff] %vm106, %v704
    // Predicated region
    $region30: #{tpu_custom_call.1} parent=1 // pred_check
      _
    $region31: #{tpu_custom_call.1} parent=1 // pred_check_branch
      %708 = sbr.rel (0) target = $region33
    $region32: #{tpu_custom_call.1} parent=1 // pred_region
      %s710 = ssub.s32 128, 128
      %711 = vsyncadd [#allocation5], %s710
      %s713 = sshll.u32 [#allocation8], 4
      %s714 = int_to_ptr.vmem [resolvable:$true] %s713
      %716 = dma.vmem_to_hbm [thread:$0]  %s714, 128, %s5, [#allocation5]
    $region33: #{tpu_custom_call.1} parent=1 // pred_fallthru
      _
    // Predicated region
    $region34: #{tpu_custom_call.1} parent=1 // pred_check
      _
    $region35: #{tpu_custom_call.1} parent=1 // pred_check_branch
      %718 = sbr.rel (0) target = $region37
    $region36: #{tpu_custom_call.1} parent=1 // pred_region
      %s720 = ssub.s32 128, 128
      %721 = vsyncadd [#allocation10], %s720
      %s723 = sshll.u32 [#allocation9], 4
      %s724 = int_to_ptr.vmem [resolvable:$true] %s723
      %726 = dma.vmem_to_hbm [thread:$0]  %s724, 128, %s6, [#allocation10]
    $region37: #{tpu_custom_call.1} parent=1 // pred_fallthru
      _
    // Predicated region
    $region38: #{tpu_custom_call.1} parent=1 // pred_check
      _
    $region39: #{tpu_custom_call.1} parent=1 // pred_check_branch
      %728 = sbr.rel (0) target = $region41
    $region40: #{tpu_custom_call.1} parent=1 // pred_region
      %729 = dma.done [#allocation5], 128
    $region41: #{tpu_custom_call.1} parent=1 // pred_fallthru
      _
    // Predicated region
    $region42: #{tpu_custom_call.1} parent=1 // pred_check
      _
    $region43: #{tpu_custom_call.1} parent=1 // pred_check_branch
      %731 = sbr.rel (0) target = $region45
    $region44: #{tpu_custom_call.1} parent=1 // pred_region
      %732 = dma.done [#allocation10], 128
    $region45: #{tpu_custom_call.1} parent=1 // pred_fallthru
      _
    %733 = vsyncpa [#allocation4], 1
    %734 = vsyncpa [#allocation7], 1
    %735 = vsyncpa [#allocation5], 1
    %736 = vsyncpa [#allocation10], 1

// kernel: tpu_custom_call.1
$region0: #{tpu_custom_call.1}
  #allocation0 [shape = 'u32[]', space=smem, size = 0x4, offset = 0x4, fixed_abs, tag = 'smem constant byte address 0x4 - core index']
  #allocation1 [shape = 'u32[144,128]{1,0:T(1,128)}', space=vmem, size = 0x12000, scoped, tag = 'internal scratch']
  #allocation2 [shape = 'f32[1,1]{1,0:T(1,128)S(1)}', space=vmem, size = 0x200, scoped, tag = 'scoped memory for tpu_custom_call.1']
  %s0 = inlined_call_operand.hbm [shape: bf16[8,8,32], index: 0, kind: input, shape index: {}]
  %s1 = inlined_call_operand.hbm [shape: bf16[32,32], index: 1, kind: input, shape index: {}]
  %s2 = inlined_call_operand.vmem [shape: f32[1,32], index: 2, kind: input, shape index: {}]
  %s3 = inlined_call_operand.vmem [shape: f32[1,32], index: 3, kind: input, shape index: {}]
  %s4 = inlined_call_operand.<no memory space> [shape: f32[1,1], index: 4, kind: input, shape index: {}]
  %s5 = inlined_call_operand.hbm [shape: f32[8,32], index: 5, kind: output, shape index: {0}]
  %s6 = inlined_call_operand.hbm [shape: f32[8,8], index: 6, kind: output, shape index: {1}]
  %7 = xla_tuple %s5, %s6
  %s8 = sld [smem:[#allocation0]]
  $region46: #{tpu_custom_call.1} parent=0
    _
  %s10 = ssub.s32 1, %s8
  %s11 = scalar_select 0, %s10, %s8
  %v12 = vstv %s4
  %13 = vst [vmem:[#allocation2] sm:$0x1] %v12
  $region1: #{tpu_custom_call.1} parent=0
    #allocation3 [shape = 'u8[16384]{0}', space=vmem, size = 0x4000, scoped, tag = 'input window, operand 0, single buffered']
    #allocation4 [shape = 's32[1]{0}', space=sflag, size = 0x4, scoped, tag = 'scoped memory for tpu_custom_call.1']
    #allocation5 [shape = 's32[1]{0}', space=sflag, size = 0x4, scoped, tag = 'scoped memory for tpu_custom_call.1']
    #allocation6 [shape = 'u8[8192]{0}', space=vmem, size = 0x2000, scoped, tag = 'input window, operand 1, single buffered']
    #allocation7 [shape = 's32[1]{0}', space=sflag, size = 0x4, scoped, tag = 'scoped memory for tpu_custom_call.1']
    #allocation8 [shape = 'u8[4096]{0}', space=vmem, size = 0x1000, scoped, tag = 'output window, operand 0, single buffered']
    #allocation9 [shape = 'u8[4096]{0}', space=vmem, size = 0x1000, scoped, tag = 'output window, operand 1, single buffered']
    #allocation10 [shape = 's32[1]{0}', space=sflag, size = 0x4, scoped, tag = 'scoped memory for tpu_custom_call.1']
    %14 = vsyncpa [#allocation4], 0
    %15 = vsyncpa [#allocation7], 0
    %16 = vsyncpa [#allocation5], 0
    %17 = vsyncpa [#allocation10], 0
    // Predicated region
    $region2: #{tpu_custom_call.1} parent=1 // pred_check
      _
    $region3: #{tpu_custom_call.1} parent=1 // pred_check_branch
      %19 = sbr.rel (0) target = $region5
    $region4: #{tpu_custom_call.1} parent=1 // pred_region
      %s21 = ssub.s32 512, 512
      %22 = vsyncadd [#allocation4], %s21
      %s23 = sshll.u32 [#allocation3], 4
      %s24 = int_to_ptr.vmem [resolvable:$true] %s23
      %29 = dma.hbm_to_vmem [thread:$0]  %s0, 512, %s24, [#allocation4], 64, 64, 4
    $region5: #{tpu_custom_call.1} parent=1 // pred_fallthru
      _
    // Predicated region
    $region6: #{tpu_custom_call.1} parent=1 // pred_check
      _
    $region7: #{tpu_custom_call.1} parent=1 // pred_check_branch
      %31 = sbr.rel (0) target = $region9
    $region8: #{tpu_custom_call.1} parent=1 // pred_region
      %s33 = ssub.s32 256, 256
      %34 = vsyncadd [#allocation7], %s33
      %s35 = sshll.u32 [#allocation6], 4
      %s36 = int_to_ptr.vmem [resolvable:$true] %s35
      %41 = dma.hbm_to_vmem [thread:$0]  %s1, 256, %s36, [#allocation7], 64, 64, 4
    $region9: #{tpu_custom_call.1} parent=1 // pred_fallthru
      _
    // Predicated region
    $region10: #{tpu_custom_call.1} parent=1 // pred_check
      _
    $region11: #{tpu_custom_call.1} parent=1 // pred_check_branch
      %43 = sbr.rel (0) target = $region13
    $region12: #{tpu_custom_call.1} parent=1 // pred_region
      _
    $region13: #{tpu_custom_call.1} parent=1 // pred_fallthru
      _
    // Predicated region
    $region14: #{tpu_custom_call.1} parent=1 // pred_check
      _
    $region15: #{tpu_custom_call.1} parent=1 // pred_check_branch
      %45 = sbr.rel (0) target = $region17
    $region16: #{tpu_custom_call.1} parent=1 // pred_region
      _
    $region17: #{tpu_custom_call.1} parent=1 // pred_fallthru
      _
    // Predicated region
    $region18: #{tpu_custom_call.1} parent=1 // pred_check
      _
    $region19: #{tpu_custom_call.1} parent=1 // pred_check_branch
      %47 = sbr.rel (0) target = $region21
    $region20: #{tpu_custom_call.1} parent=1 // pred_region
      _
    $region21: #{tpu_custom_call.1} parent=1 // pred_fallthru
      _
    // Predicated region
    $region22: #{tpu_custom_call.1} parent=1 // pred_check
      _
    $region23: #{tpu_custom_call.1} parent=1 // pred_check_branch
      %49 = sbr.rel (0) target = $region25
    $region24: #{tpu_custom_call.1} parent=1 // pred_region
      %50 = dma.done [#allocation4], 512
    $region25: #{tpu_custom_call.1} parent=1 // pred_fallthru
      _
    // Predicated region
    $region26: #{tpu_custom_call.1} parent=1 // pred_check
      _
    $region27: #{tpu_custom_call.1} parent=1 // pred_check_branch
      %52 = sbr.rel (0) target = $region29
    $region28: #{tpu_custom_call.1} parent=1 // pred_region
      %53 = dma.done [#allocation7], 256
    $region29: #{tpu_custom_call.1} parent=1 // pred_fallthru
      _
    %v55 = vld [vmem:[#allocation3] sm:$0xf]
    %v56 = vld [vmem:[#allocation3 + $0x4] sm:$0xf]
    %v57 = vld [vmem:[#allocation3 + $0x8] sm:$0xf]
    %v58 = vld [vmem:[#allocation3 + $0xc] sm:$0xf]
    %v59 = vld [vmem:[#allocation3 + $0x10] sm:$0xf]
    %v60 = vld [vmem:[#allocation3 + $0x14] sm:$0xf]
    %v61 = vld [vmem:[#allocation3 + $0x18] sm:$0xf]
    %v62 = vld [vmem:[#allocation3 + $0x1c] sm:$0xf]
    %v63 = vld [vmem:[#allocation6] sm:$0xf]
    %v64 = vld [vmem:[#allocation6 + $0x4] sm:$0xf]
    %v65 = vld [vmem:[#allocation6 + $0x8] sm:$0xf]
    %v66 = vld [vmem:[#allocation6 + $0xc] sm:$0xf]
    %v67 = vld [vmem:[%s2] sm:$0x1]
    %v69 = vlaneseq
    %v70 = vshrl.u32 %v69, 7
    %v71 = vsub.s32 0, %v70
    %v72 = vrot.slane %v67, %v71
    %v82 = vunpack.c.l.b16 %v55
    %v83 = vunpack.c.l.b16 %v56
    %v84 = vunpack.c.l.b16 %v57
    %v85 = vunpack.c.l.b16 %v58
    %v86 = vunpack.c.l.b16 %v59
    %v87 = vunpack.c.l.b16 %v60
    %v88 = vunpack.c.l.b16 %v61
    %v89 = vunpack.c.l.b16 %v62
    %v90 = vpack.c.b16 %v83, %v82
    %v91 = vpack.c.b16 %v85, %v84
    %v92 = vpack.c.b16 %v87, %v86
    %v93 = vpack.c.b16 %v89, %v88
    %v98 = vunpack.c.l.b16 %v63
    %v99 = vunpack.c.l.b16 %v64
    %v100 = vunpack.c.l.b16 %v65
    %v101 = vunpack.c.l.b16 %v66
    %v102 = vpack.c.b16 %v99, %v98
    %v103 = vpack.c.b16 %v101, %v100
    %vm106 = vcmask 261120
    %v108 = vsel %vm106, %v90, 0
    %v111 = vsel %vm106, %v91, 0
    %v114 = vsel %vm106, %v92, 0
    %v117 = vsel %vm106, %v93, 0
    %119 = vmatprep.subr.bf16.mxu0 0
    %120 = vmatpush1.bf16.msra.mxu0 0
    %121 = vmatprep.subr.bf16.mxu0 0
    %122 = vmatpush1.bf16.msra.mxu0 0
    %123 = vmatprep.subr.bf16.mxu0 0
    %124 = vmatpush1.bf16.msra.mxu0 0
    %125 = vmatprep.subr.bf16.mxu0 0
    %126 = vmatpush1.bf16.msra.mxu0 0
    %127 = vmatprep.subr.bf16.mxu0 0
    %128 = vmatpush1.bf16.msra.mxu0 0
    %129 = vmatprep.subr.bf16.mxu0 0
    %130 = vmatpush1.bf16.msra.mxu0 0
    %131 = vmatprep.subr.bf16.mxu0 0
    %132 = vmatpush1.bf16.msra.mxu0 %v103
    %133 = vmatprep.subr.bf16.mxu0 0
    %134 = vmatpush1.bf16.msra.mxu0 %v102
    %135 = vmatprep.subr.bf16.mxu0 0
    %136 = vmatpush2.bf16.msra.mxu0 0
    %137 = vmatprep.subr.bf16.mxu0 0
    %138 = vmatpush2.bf16.msra.mxu0 0
    %139 = vmatprep.subr.bf16.mxu0 0
    %140 = vmatpush2.bf16.msra.mxu0 0
    %141 = vmatprep.subr.bf16.mxu0 0
    %142 = vmatpush2.bf16.msra.mxu0 0
    %143 = vmatprep.subr.bf16.mxu0 0
    %144 = vmatpush2.bf16.msra.mxu0 0
    %145 = vmatprep.subr.bf16.mxu0 0
    %146 = vmatpush2.bf16.msra.mxu0 0
    %147 = vmatprep.subr.bf16.mxu0 0
    %148 = vmatpush2.bf16.msra.mxu0 0
    %149 = vmatprep.subr.bf16.mxu0 0
    %150 = vmatpush2.bf16.msra.mxu0 0
    %151 = vmatprep.mubr.bf16.mxu0 0
    %152 = vmatmul.mubr.bf16.gmra.mxu0 %v108
    %v153 = vpop.f32.mrf.mxu0
    %v154 = vadd.f32 %v72, %v153
    %v155 = vpop.f32.mrf.mxu0
    %v156 = vpop.f32.mrf.mxu0
    %v157 = vadd.f32 %v72, %v156
    %v158 = vpop.f32.mrf.mxu0
    %159 = vmatprep.mubr.bf16.mxu0 0
    %160 = vmatmul.mubr.bf16.gmra.mxu0 %v111
    %v161 = vpop.f32.mrf.mxu0
    %v162 = vadd.f32 %v72, %v161
    %v163 = vpop.f32.mrf.mxu0
    %v164 = vpop.f32.mrf.mxu0
    %v165 = vadd.f32 %v72, %v164
    %v166 = vpop.f32.mrf.mxu0
    %167 = vmatprep.mubr.bf16.mxu0 0
    %168 = vmatmul.mubr.bf16.gmra.mxu0 %v114
    %v169 = vpop.f32.mrf.mxu0
    %v170 = vadd.f32 %v72, %v169
    %v171 = vpop.f32.mrf.mxu0
    %v172 = vpop.f32.mrf.mxu0
    %v173 = vadd.f32 %v72, %v172
    %v174 = vpop.f32.mrf.mxu0
    %175 = vmatprep.mubr.bf16.mxu0 0
    %176 = vmatmul.mubr.bf16.gmra.mxu0 %v117
    %v177 = vpop.f32.mrf.mxu0
    %v178 = vadd.f32 %v72, %v177
    %v179 = vpop.f32.mrf.mxu0
    %v180 = vpop.f32.mrf.mxu0
    %v181 = vadd.f32 %v72, %v180
    %v182 = vpop.f32.mrf.mxu0
    %183 = vdwg.mxu0
    %v184 = vpack.c.bf16 %v157, %v154
    %v185 = vpack.c.bf16 %v165, %v162
    %v186 = vpack.c.bf16 %v173, %v170
    %v187 = vpack.c.bf16 %v181, %v178
    %v188 = vtanh.bf16.pop %v184
    %v189 = vtanh.bf16.pop %v185
    %v190 = vtanh.bf16.pop %v186
    %v191 = vtanh.bf16.pop %v187
    %v192 = vld [vmem:[%s3] sm:$0x1]
    %v193 = vunpack.c.l.bf16 %v188
    %v194 = vunpack.c.h.bf16 %v188
    %v195 = vunpack.c.l.bf16 %v189
    %v196 = vunpack.c.h.bf16 %v189
    %v197 = vunpack.c.l.bf16 %v190
    %v198 = vunpack.c.h.bf16 %v190
    %v199 = vunpack.c.l.bf16 %v191
    %v200 = vunpack.c.h.bf16 %v191
    %v202 = vlaneseq
    %v203 = vshrl.u32 %v202, 7
    %v204 = vsub.s32 0, %v203
    %v205 = vrot.slane %v192, %v204
    %v207 = vmul.f32 %v193, %v205
    %v208 = vmul.f32 %v194, %v205
    %v209 = vmul.f32 %v195, %v205
    %v210 = vmul.f32 %v196, %v205
    %v211 = vmul.f32 %v197, %v205
    %v212 = vmul.f32 %v198, %v205
    %v213 = vmul.f32 %v199, %v205
    %v214 = vmul.f32 %v200, %v205
    %v215 = vsel %vm106, %v207, 0.0
    %216 = vadd.xlane.f32.xlu0 %v215
    %v217 = vpop.xlane.xlu0 %216
    %v218 = vsel %vm106, %v208, 0.0
    %219 = vadd.xlane.f32.xlu0 %v218
    %v220 = vpop.xlane.xlu0 %219
    %v221 = vsel %vm106, %v209, 0.0
    %222 = vadd.xlane.f32.xlu0 %v221
    %v223 = vpop.xlane.xlu0 %222
    %v224 = vsel %vm106, %v210, 0.0
    %225 = vadd.xlane.f32.xlu0 %v224
    %v226 = vpop.xlane.xlu0 %225
    %v227 = vsel %vm106, %v211, 0.0
    %228 = vadd.xlane.f32.xlu0 %v227
    %v229 = vpop.xlane.xlu0 %228
    %v230 = vsel %vm106, %v212, 0.0
    %231 = vadd.xlane.f32.xlu0 %v230
    %v232 = vpop.xlane.xlu0 %231
    %v233 = vsel %vm106, %v213, 0.0
    %234 = vadd.xlane.f32.xlu0 %v233
    %v235 = vpop.xlane.xlu0 %234
    %v236 = vsel %vm106, %v214, 0.0
    %237 = vadd.xlane.f32.xlu0 %v236
    %v238 = vpop.xlane.xlu0 %237
    %v239 = vld [vmem:[#allocation2] sm:$0x1]
    %v241 = vlaneseq
    %v242 = vshrl.u32 %v241, 7
    %v243 = vsub.s32 0, %v242
    %v244 = vrot.slane %v239, %v243
    %v246 = vadd.f32 %v217, %v244
    %v247 = vadd.f32 %v220, %v244
    %v248 = vadd.f32 %v223, %v244
    %v249 = vadd.f32 %v226, %v244
    %v250 = vadd.f32 %v229, %v244
    %v251 = vadd.f32 %v232, %v244
    %v252 = vadd.f32 %v235, %v244
    %v253 = vadd.f32 %v238, %v244
    %262 = vset.pattern.permute.xlu0 0
    %263 = vperm.xlu0 %262, %v246
    %v264 = vpop.permute.xlu0 %263
    %265 = vset.pattern.permute.xlu0 0
    %266 = vperm.xlu0 %265, %v247
    %v267 = vpop.permute.xlu0 %266
    %268 = vset.pattern.permute.xlu0 0
    %269 = vperm.xlu0 %268, %v248
    %v270 = vpop.permute.xlu0 %269
    %271 = vset.pattern.permute.xlu0 0
    %272 = vperm.xlu0 %271, %v249
    %v273 = vpop.permute.xlu0 %272
    %274 = vset.pattern.permute.xlu0 0
    %275 = vperm.xlu0 %274, %v250
    %v276 = vpop.permute.xlu0 %275
    %277 = vset.pattern.permute.xlu0 0
    %278 = vperm.xlu0 %277, %v251
    %v279 = vpop.permute.xlu0 %278
    %280 = vset.pattern.permute.xlu0 0
    %281 = vperm.xlu0 %280, %v252
    %v282 = vpop.permute.xlu0 %281
    %283 = vset.pattern.permute.xlu0 0
    %284 = vperm.xlu0 %283, %v253
    %v285 = vpop.permute.xlu0 %284
    %v286 = vlaneseq
    %v287 = vand.u32 %v286, 127
    %v288 = vlaneseq
    %v289 = vshrl.u32 %v288, 7
    %v290 = vsub.s32 %v287, %v289
    %v291 = vrot.slane %v264, %v290
    %v292 = vlaneseq
    %v293 = vshrl.u32 %v292, 7
    %v294 = vsub.s32 %v287, %v293
    %v295 = vrot.slane %v267, %v294
    %v296 = vlaneseq
    %v297 = vshrl.u32 %v296, 7
    %v298 = vsub.s32 %v287, %v297
    %v299 = vrot.slane %v270, %v298
    %v300 = vlaneseq
    %v301 = vshrl.u32 %v300, 7
    %v302 = vsub.s32 %v287, %v301
    %v303 = vrot.slane %v273, %v302
    %v304 = vlaneseq
    %v305 = vshrl.u32 %v304, 7
    %v306 = vsub.s32 %v287, %v305
    %v307 = vrot.slane %v276, %v306
    %v308 = vlaneseq
    %v309 = vshrl.u32 %v308, 7
    %v310 = vsub.s32 %v287, %v309
    %v311 = vrot.slane %v279, %v310
    %v312 = vlaneseq
    %v313 = vshrl.u32 %v312, 7
    %v314 = vsub.s32 %v287, %v313
    %v315 = vrot.slane %v282, %v314
    %v316 = vlaneseq
    %v317 = vshrl.u32 %v316, 7
    %v318 = vsub.s32 %v287, %v317
    %v319 = vrot.slane %v285, %v318
    %vm320 = vcmask 1041409
    %v321 = vsel %vm320, %v295, %v291
    %vm322 = vcmask 1042434
    %v323 = vsel %vm322, %v299, %v321
    %vm324 = vcmask 1043459
    %v325 = vsel %vm324, %v303, %v323
    %vm326 = vcmask 1044484
    %v327 = vsel %vm326, %v307, %v325
    %vm328 = vcmask 1045509
    %v329 = vsel %vm328, %v311, %v327
    %vm330 = vcmask 1046534
    %v331 = vsel %vm330, %v315, %v329
    %vm332 = vcmask 1047559
    %v333 = vsel %vm332, %v319, %v331
    %vm335 = vcmask 64512
    %v336 = vsel %vm335, %v333, -inf
    %337 = vmax.xlane.f32.xlu0 %v336
    %v338 = vpop.xlane.xlu0 %337
    %v340 = vlaneseq
    %v341 = vshrl.u32 %v340, 7
    %v342 = vsub.s32 0, %v341
    %v343 = vrot.slane %v338, %v342
    %v344 = vlaneseq
    %v345 = vshrl.u32 %v344, 7
    %v346 = vsub.s32 1, %v345
    %v347 = vrot.slane %v338, %v346
    %v348 = vlaneseq
    %v349 = vshrl.u32 %v348, 7
    %v350 = vsub.s32 2, %v349
    %v351 = vrot.slane %v338, %v350
    %v352 = vlaneseq
    %v353 = vshrl.u32 %v352, 7
    %v354 = vsub.s32 3, %v353
    %v355 = vrot.slane %v338, %v354
    %v356 = vlaneseq
    %v357 = vshrl.u32 %v356, 7
    %v358 = vsub.s32 4, %v357
    %v359 = vrot.slane %v338, %v358
    %v360 = vlaneseq
    %v361 = vshrl.u32 %v360, 7
    %v362 = vsub.s32 5, %v361
    %v363 = vrot.slane %v338, %v362
    %v364 = vlaneseq
    %v365 = vshrl.u32 %v364, 7
    %v366 = vsub.s32 6, %v365
    %v367 = vrot.slane %v338, %v366
    %v368 = vlaneseq
    %v369 = vshrl.u32 %v368, 7
    %v370 = vsub.s32 7, %v369
    %v371 = vrot.slane %v338, %v370
    %v380 = vsub.f32 %v246, %v343
    %v381 = vsub.f32 %v247, %v347
    %v382 = vsub.f32 %v248, %v351
    %v383 = vsub.f32 %v249, %v355
    %v384 = vsub.f32 %v250, %v359
    %v385 = vsub.f32 %v251, %v363
    %v386 = vsub.f32 %v252, %v367
    %v387 = vsub.f32 %v253, %v371
    %v388 = vmul.f32 %v380, 1.442695
    %v389 = vpow.pop %v388
    %v390 = vmul.f32 %v381, 1.442695
    %v391 = vpow.pop %v390
    %v392 = vmul.f32 %v382, 1.442695
    %v393 = vpow.pop %v392
    %v394 = vmul.f32 %v383, 1.442695
    %v395 = vpow.pop %v394
    %v396 = vmul.f32 %v384, 1.442695
    %v397 = vpow.pop %v396
    %v398 = vmul.f32 %v385, 1.442695
    %v399 = vpow.pop %v398
    %v400 = vmul.f32 %v386, 1.442695
    %v401 = vpow.pop %v400
    %v402 = vmul.f32 %v387, 1.442695
    %v403 = vpow.pop %v402
    %412 = vset.pattern.permute.xlu0 0
    %413 = vperm.xlu0 %412, %v389
    %v414 = vpop.permute.xlu0 %413
    %415 = vset.pattern.permute.xlu0 0
    %416 = vperm.xlu0 %415, %v391
    %v417 = vpop.permute.xlu0 %416
    %418 = vset.pattern.permute.xlu0 0
    %419 = vperm.xlu0 %418, %v393
    %v420 = vpop.permute.xlu0 %419
    %421 = vset.pattern.permute.xlu0 0
    %422 = vperm.xlu0 %421, %v395
    %v423 = vpop.permute.xlu0 %422
    %424 = vset.pattern.permute.xlu0 0
    %425 = vperm.xlu0 %424, %v397
    %v426 = vpop.permute.xlu0 %425
    %427 = vset.pattern.permute.xlu0 0
    %428 = vperm.xlu0 %427, %v399
    %v429 = vpop.permute.xlu0 %428
    %430 = vset.pattern.permute.xlu0 0
    %431 = vperm.xlu0 %430, %v401
    %v432 = vpop.permute.xlu0 %431
    %433 = vset.pattern.permute.xlu0 0
    %434 = vperm.xlu0 %433, %v403
    %v435 = vpop.permute.xlu0 %434
    %v436 = vlaneseq
    %v437 = vshrl.u32 %v436, 7
    %v438 = vsub.s32 %v287, %v437
    %v439 = vrot.slane %v414, %v438
    %v440 = vlaneseq
    %v441 = vshrl.u32 %v440, 7
    %v442 = vsub.s32 %v287, %v441
    %v443 = vrot.slane %v417, %v442
    %v444 = vlaneseq
    %v445 = vshrl.u32 %v444, 7
    %v446 = vsub.s32 %v287, %v445
    %v447 = vrot.slane %v420, %v446
    %v448 = vlaneseq
    %v449 = vshrl.u32 %v448, 7
    %v450 = vsub.s32 %v287, %v449
    %v451 = vrot.slane %v423, %v450
    %v452 = vlaneseq
    %v453 = vshrl.u32 %v452, 7
    %v454 = vsub.s32 %v287, %v453
    %v455 = vrot.slane %v426, %v454
    %v456 = vlaneseq
    %v457 = vshrl.u32 %v456, 7
    %v458 = vsub.s32 %v287, %v457
    %v459 = vrot.slane %v429, %v458
    %v460 = vlaneseq
    %v461 = vshrl.u32 %v460, 7
    %v462 = vsub.s32 %v287, %v461
    %v463 = vrot.slane %v432, %v462
    %v464 = vlaneseq
    %v465 = vshrl.u32 %v464, 7
    %v466 = vsub.s32 %v287, %v465
    %v467 = vrot.slane %v435, %v466
    %v468 = vsel %vm320, %v443, %v439
    %v469 = vsel %vm322, %v447, %v468
    %v470 = vsel %vm324, %v451, %v469
    %v471 = vsel %vm326, %v455, %v470
    %v472 = vsel %vm328, %v459, %v471
    %v473 = vsel %vm330, %v463, %v472
    %v474 = vsel %vm332, %v467, %v473
    %v476 = vsel %vm335, %v474, 0.0
    %477 = vadd.xlane.f32.xlu0 %v476
    %v478 = vpop.xlane.xlu0 %477
    %v479 = vrcp.pop %v478
    %v481 = vlaneseq
    %v482 = vshrl.u32 %v481, 7
    %v483 = vsub.s32 0, %v482
    %v484 = vrot.slane %v479, %v483
    %v485 = vlaneseq
    %v486 = vshrl.u32 %v485, 7
    %v487 = vsub.s32 1, %v486
    %v488 = vrot.slane %v479, %v487
    %v489 = vlaneseq
    %v490 = vshrl.u32 %v489, 7
    %v491 = vsub.s32 2, %v490
    %v492 = vrot.slane %v479, %v491
    %v493 = vlaneseq
    %v494 = vshrl.u32 %v493, 7
    %v495 = vsub.s32 3, %v494
    %v496 = vrot.slane %v479, %v495
    %v497 = vlaneseq
    %v498 = vshrl.u32 %v497, 7
    %v499 = vsub.s32 4, %v498
    %v500 = vrot.slane %v479, %v499
    %v501 = vlaneseq
    %v502 = vshrl.u32 %v501, 7
    %v503 = vsub.s32 5, %v502
    %v504 = vrot.slane %v479, %v503
    %v505 = vlaneseq
    %v506 = vshrl.u32 %v505, 7
    %v507 = vsub.s32 6, %v506
    %v508 = vrot.slane %v479, %v507
    %v509 = vlaneseq
    %v510 = vshrl.u32 %v509, 7
    %v511 = vsub.s32 7, %v510
    %v512 = vrot.slane %v479, %v511
    %v521 = vmul.f32 %v389, %v484
    %v522 = vmul.f32 %v391, %v488
    %v523 = vmul.f32 %v393, %v492
    %v524 = vmul.f32 %v395, %v496
    %v525 = vmul.f32 %v397, %v500
    %v526 = vmul.f32 %v399, %v504
    %v527 = vmul.f32 %v401, %v508
    %v528 = vmul.f32 %v403, %v512
    %537 = vset.pattern.permute.xlu0 0
    %538 = vperm.xlu0 %537, %v521
    %v539 = vpop.permute.xlu0 %538
    %540 = vset.pattern.permute.xlu0 0
    %541 = vperm.xlu0 %540, %v522
    %v542 = vpop.permute.xlu0 %541
    %543 = vset.pattern.permute.xlu0 0
    %544 = vperm.xlu0 %543, %v523
    %v545 = vpop.permute.xlu0 %544
    %546 = vset.pattern.permute.xlu0 0
    %547 = vperm.xlu0 %546, %v524
    %v548 = vpop.permute.xlu0 %547
    %549 = vset.pattern.permute.xlu0 0
    %550 = vperm.xlu0 %549, %v525
    %v551 = vpop.permute.xlu0 %550
    %552 = vset.pattern.permute.xlu0 0
    %553 = vperm.xlu0 %552, %v526
    %v554 = vpop.permute.xlu0 %553
    %555 = vset.pattern.permute.xlu0 0
    %556 = vperm.xlu0 %555, %v527
    %v557 = vpop.permute.xlu0 %556
    %558 = vset.pattern.permute.xlu0 0
    %559 = vperm.xlu0 %558, %v528
    %v560 = vpop.permute.xlu0 %559
    %v561 = vlaneseq
    %v562 = vshrl.u32 %v561, 7
    %v563 = vsub.s32 %v287, %v562
    %v564 = vrot.slane %v539, %v563
    %v565 = vlaneseq
    %v566 = vshrl.u32 %v565, 7
    %v567 = vsub.s32 %v287, %v566
    %v568 = vrot.slane %v542, %v567
    %v569 = vlaneseq
    %v570 = vshrl.u32 %v569, 7
    %v571 = vsub.s32 %v287, %v570
    %v572 = vrot.slane %v545, %v571
    %v573 = vlaneseq
    %v574 = vshrl.u32 %v573, 7
    %v575 = vsub.s32 %v287, %v574
    %v576 = vrot.slane %v548, %v575
    %v577 = vlaneseq
    %v578 = vshrl.u32 %v577, 7
    %v579 = vsub.s32 %v287, %v578
    %v580 = vrot.slane %v551, %v579
    %v581 = vlaneseq
    %v582 = vshrl.u32 %v581, 7
    %v583 = vsub.s32 %v287, %v582
    %v584 = vrot.slane %v554, %v583
    %v585 = vlaneseq
    %v586 = vshrl.u32 %v585, 7
    %v587 = vsub.s32 %v287, %v586
    %v588 = vrot.slane %v557, %v587
    %v589 = vlaneseq
    %v590 = vshrl.u32 %v589, 7
    %v591 = vsub.s32 %v287, %v590
    %v592 = vrot.slane %v560, %v591
    %v593 = vsel %vm320, %v568, %v564
    %v594 = vsel %vm322, %v572, %v593
    %v595 = vsel %vm324, %v576, %v594
    %v596 = vsel %vm326, %v580, %v595
    %v597 = vsel %vm328, %v584, %v596
    %v598 = vsel %vm330, %v588, %v597
    %v599 = vsel %vm332, %v592, %v598
    %601 = vst.msk [vmem:[#allocation9] sm:$0xff] %vm335, %v599
    %v602 = vld [vmem:[#allocation3] sm:$0xf]
    %v603 = vld [vmem:[#allocation3 + $0x4] sm:$0xf]
    %v604 = vld [vmem:[#allocation3 + $0x8] sm:$0xf]
    %v605 = vld [vmem:[#allocation3 + $0xc] sm:$0xf]
    %v606 = vld [vmem:[#allocation3 + $0x10] sm:$0xf]
    %v607 = vld [vmem:[#allocation3 + $0x14] sm:$0xf]
    %v608 = vld [vmem:[#allocation3 + $0x18] sm:$0xf]
    %v609 = vld [vmem:[#allocation3 + $0x1c] sm:$0xf]
    %v610 = vunpack.c.l.bf16 %v602
    %v611 = vunpack.c.l.bf16 %v603
    %v612 = vunpack.c.l.bf16 %v604
    %v613 = vunpack.c.l.bf16 %v605
    %v614 = vunpack.c.l.bf16 %v606
    %v615 = vunpack.c.l.bf16 %v607
    %v616 = vunpack.c.l.bf16 %v608
    %v617 = vunpack.c.l.bf16 %v609
    %v626 = vmul.f32 %v610, %v539
    %v627 = vmul.f32 %v611, %v542
    %v628 = vmul.f32 %v612, %v545
    %v629 = vmul.f32 %v613, %v548
    %v630 = vmul.f32 %v614, %v551
    %v631 = vmul.f32 %v615, %v554
    %v632 = vmul.f32 %v616, %v557
    %v633 = vmul.f32 %v617, %v560
    %v634 = vsel %vm106, %v626, 0.0
    %v635 = vrot.slane %v634, 4
    %v636 = vadd.f32 %v634, %v635
    %v637 = vrot.slane %v636, 2
    %v638 = vadd.f32 %v636, %v637
    %v639 = vrot.slane %v638, 1
    %v640 = vadd.f32 %v638, %v639
    %v641 = vsel %vm106, %v627, 0.0
    %v642 = vrot.slane %v641, 4
    %v643 = vadd.f32 %v641, %v642
    %v644 = vrot.slane %v643, 2
    %v645 = vadd.f32 %v643, %v644
    %v646 = vrot.slane %v645, 1
    %v647 = vadd.f32 %v645, %v646
    %v648 = vsel %vm106, %v628, 0.0
    %v649 = vrot.slane %v648, 4
    %v650 = vadd.f32 %v648, %v649
    %v651 = vrot.slane %v650, 2
    %v652 = vadd.f32 %v650, %v651
    %v653 = vrot.slane %v652, 1
    %v654 = vadd.f32 %v652, %v653
    %v655 = vsel %vm106, %v629, 0.0
    %v656 = vrot.slane %v655, 4
    %v657 = vadd.f32 %v655, %v656
    %v658 = vrot.slane %v657, 2
    %v659 = vadd.f32 %v657, %v658
    %v660 = vrot.slane %v659, 1
    %v661 = vadd.f32 %v659, %v660
    %v662 = vsel %vm106, %v630, 0.0
    %v663 = vrot.slane %v662, 4
    %v664 = vadd.f32 %v662, %v663
    %v665 = vrot.slane %v664, 2
    %v666 = vadd.f32 %v664, %v665
    %v667 = vrot.slane %v666, 1
    %v668 = vadd.f32 %v666, %v667
    %v669 = vsel %vm106, %v631, 0.0
    %v670 = vrot.slane %v669, 4
    %v671 = vadd.f32 %v669, %v670
    %v672 = vrot.slane %v671, 2
    %v673 = vadd.f32 %v671, %v672
    %v674 = vrot.slane %v673, 1
    %v675 = vadd.f32 %v673, %v674
    %v676 = vsel %vm106, %v632, 0.0
    %v677 = vrot.slane %v676, 4
    %v678 = vadd.f32 %v676, %v677
    %v679 = vrot.slane %v678, 2
    %v680 = vadd.f32 %v678, %v679
    %v681 = vrot.slane %v680, 1
    %v682 = vadd.f32 %v680, %v681
    %v683 = vsel %vm106, %v633, 0.0
    %v684 = vrot.slane %v683, 4
    %v685 = vadd.f32 %v683, %v684
    %v686 = vrot.slane %v685, 2
    %v687 = vadd.f32 %v685, %v686
    %v688 = vrot.slane %v687, 1
    %v689 = vadd.f32 %v687, %v688
    %v698 = vsel %vm320, %v647, %v640
    %v699 = vsel %vm322, %v654, %v698
    %v700 = vsel %vm324, %v661, %v699
    %v701 = vsel %vm326, %v668, %v700
    %v702 = vsel %vm328, %v675, %v701
    %v703 = vsel %vm330, %v682, %v702
    %v704 = vsel %vm332, %v689, %v703
    %706 = vst.msk [vmem:[#allocation8] sm:$0xff] %vm106, %v704
    // Predicated region
    $region30: #{tpu_custom_call.1} parent=1 // pred_check
      _
    $region31: #{tpu_custom_call.1} parent=1 // pred_check_branch
      %708 = sbr.rel (0) target = $region33
    $region32: #{tpu_custom_call.1} parent=1 // pred_region
      %s710 = ssub.s32 128, 128
      %711 = vsyncadd [#allocation5], %s710
      %s713 = sshll.u32 [#allocation8], 4
      %s714 = int_to_ptr.vmem [resolvable:$true] %s713
      %716 = dma.vmem_to_hbm [thread:$0]  %s714, 128, %s5, [#allocation5]
    $region33: #{tpu_custom_call.1} parent=1 // pred_fallthru
      _
    // Predicated region
    $region34: #{tpu_custom_call.1} parent=1 // pred_check
      _
    $region35: #{tpu_custom_call.1} parent=1 // pred_check_branch
      %718 = sbr.rel (0) target = $region37
    $region36: #{tpu_custom_call.1} parent=1 // pred_region
      %s720 = ssub.s32 128, 128
      %721 = vsyncadd [#allocation10], %s720
      %s723 = sshll.u32 [#allocation9], 4
      %s724 = int_to_ptr.vmem [resolvable:$true] %s723
      %726 = dma.vmem_to_hbm [thread:$0]  %s724, 128, %s6, [#allocation10]
    $region37: #{tpu_custom_call.1} parent=1 // pred_fallthru
      _
    // Predicated region
    $region38: #{tpu_custom_call.1} parent=1 // pred_check
      _
    $region39: #{tpu_custom_call.1} parent=1 // pred_check_branch
      %728 = sbr.rel (0) target = $region41
    $region40: #{tpu_custom_call.1} parent=1 // pred_region
      %729 = dma.done [#allocation5], 128
    $region41: #{tpu_custom_call.1} parent=1 // pred_fallthru
      _
    // Predicated region
    $region42: #{tpu_custom_call.1} parent=1 // pred_check
      _
    $region43: #{tpu_custom_call.1} parent=1 // pred_check_branch
      %731 = sbr.rel (0) target = $region45
    $region44: #{tpu_custom_call.1} parent=1 // pred_region
      %732 = dma.done [#allocation10], 128
    $region45: #{tpu_custom_call.1} parent=1 // pred_fallthru
      _
    %733 = vsyncpa [#allocation4], 1
    %734 = vsyncpa [#allocation7], 1
    %735 = vsyncpa [#allocation5], 1
    %736 = vsyncpa [#allocation10], 1

</llo_original>
